<compile_context>
chip_gen: v6e
topology: v6e:2x2x1
jax: 0.10.0
libtpu: 0.0.40
codegen_flags: <defaults>
</compile_context>

<pallas_src>
import functools

import jax
import jax.numpy as jnp
from jax import lax
from jax.experimental import pallas as pl
from jax.experimental.pallas import tpu as pltpu

EPS = 1e-5  # torch.nn.LayerNorm default


# ----------------------------- kernel --------------------------------------- #

def mlp_ln_kernel(x_ref, w1_ref, b1_ref, w2_ref, b2_ref, w3_ref, b3_ref,
                  g_ref, bt_ref, out_ref):
    """One row-tile: (TM, Din) -> (TM, Dout). MXU matmuls in bf16, f32 acc."""
    x = x_ref[...].astype(jnp.bfloat16)            # f32 in HBM, cast on VPU
    h = jnp.dot(x, w1_ref[...], preferred_element_type=jnp.float32) + b1_ref[...]
    h = jnp.maximum(h, 0.0).astype(jnp.bfloat16)   # ReLU in f32, bf16 into MXU
    h = jnp.dot(h, w2_ref[...], preferred_element_type=jnp.float32) + b2_ref[...]
    h = jnp.maximum(h, 0.0).astype(jnp.bfloat16)
    o = jnp.dot(h, w3_ref[...], preferred_element_type=jnp.float32) + b3_ref[...]
    # LayerNorm in f32 (biased variance, like torch).
    mean = jnp.mean(o, axis=-1, keepdims=True)
    var = jnp.mean((o - mean) ** 2, axis=-1, keepdims=True)
    y = (o - mean) * lax.rsqrt(var + EPS) * g_ref[...] + bt_ref[...]
    out_ref[...] = y.astype(out_ref.dtype)


# ----------------------------- wrapper --------------------------------------- #

def _pad_last_to_multiple(a, mult, axis):
    size = a.shape[axis]
    pad = (-size) % mult
    if pad == 0:
        return a
    widths = [(0, 0)] * a.ndim
    widths[axis] = (0, pad)
    return jnp.pad(a, widths)


def mlp_forward(x, params, *, block_rows=1024):
    """Fused MLP+LayerNorm forward. x: (N, Din) f32. Returns (N, Dout) f32."""
    w1, b1, w2, b2, w3, b3, gamma, beta = params
    n, din = x.shape
    dh = w1.shape[1]
    dout = w3.shape[1]

    # Lane-dense contraction dim: zero-pad Din up to a multiple of 128
    # (zeros contribute nothing to the matmul).  Hidden/out dims must already
    # be 128-multiples (module defaults are 128) so LayerNorm stats stay exact.
    x_p = _pad_last_to_multiple(x, 128, axis=1)
    w1_p = _pad_last_to_multiple(w1, 128, axis=0)
    din_p = x_p.shape[1]
    assert dh % 128 == 0 and dout % 128 == 0, (
        "hidden/out dims must be multiples of 128")
    # TODO(synk): masked LayerNorm for non-128-multiple out_dim not implemented.

    # Row tile: multiple of 8 sublanes; never larger than needed.
    tm = max(8, min(block_rows, ((n + 7) // 8) * 8))
    grid = (pl.cdiv(n, tm),)

    row_map = lambda i: (i, 0)
    const_map = lambda i: (0, 0)      # resident across the grid (DMA'd once)

    return pl.pallas_call(
        mlp_ln_kernel,
        out_shape=jax.ShapeDtypeStruct((n, dout), x.dtype),
        grid=grid,
        in_specs=[
            pl.BlockSpec((tm, din_p), row_map),        # x tile (pipelined)
            pl.BlockSpec((din_p, dh), const_map),      # w1
            pl.BlockSpec((1, dh), const_map),          # b1
            pl.BlockSpec((dh, dh), const_map),         # w2
            pl.BlockSpec((1, dh), const_map),          # b2
            pl.BlockSpec((dh, dout), const_map),       # w3
            pl.BlockSpec((1, dout), const_map),        # b3
            pl.BlockSpec((1, dout), const_map),        # gamma
            pl.BlockSpec((1, dout), const_map),        # beta
        ],
        out_specs=pl.BlockSpec((tm, dout), row_map),
        compiler_params=pltpu.CompilerParams(
            dimension_semantics=("parallel",),         # megacore on v7x
            vmem_limit_bytes=32 * 1024 * 1024,         # safe on v7x's 64 MiB
        ),
    )(x_p, w1_p, b1, w2, b2, w3, b3, gamma, beta)


# ----------------------------- reference ------------------------------------- #

def mlp_reference(x, params):
    """Same math in plain JAX (identical bf16 rounding) for verification."""
    w1, b1, w2, b2, w3, b3, gamma, beta = params
    h = jnp.dot(x.astype(jnp.bfloat16), w1,
                preferred_element_type=jnp.float32) + b1
    h = jnp.maximum(h, 0.0).astype(jnp.bfloat16)
    h = jnp.dot(h, w2, preferred_element_type=jnp.float32) + b2
    h = jnp.maximum(h, 0.0).astype(jnp.bfloat16)
    o = jnp.dot(h, w3, preferred_element_type=jnp.float32) + b3
    mean = jnp.mean(o, axis=-1, keepdims=True)
    var = jnp.mean((o - mean) ** 2, axis=-1, keepdims=True)
    return (o - mean) * lax.rsqrt(var + EPS) * gamma + beta


# ----------------------------- param init ------------------------------------ #

def _init_linear(key, fan_in, fan_out):
    """torch.nn.Linear default init: U(-1/sqrt(fan_in), 1/sqrt(fan_in))."""
    kw, kb = jax.random.split(key)
    bound = 1.0 / (fan_in ** 0.5)
    w = jax.random.uniform(kw, (fan_in, fan_out), jnp.float32, -bound, bound)
    b = jax.random.uniform(kb, (1, fan_out), jnp.float32, -bound, bound)
    return w.astype(jnp.bfloat16), b        # bf16 weights for MXU, f32 bias


def init_mlp(key, in_dim, out_dim=128, hidden_dim=128):
    # hidden_layers=2 (module default) => 3 Linear layers total.
    k1, k2, k3 = jax.random.split(key, 3)
    w1, b1 = _init_linear(k1, in_dim, hidden_dim)
    w2, b2 = _init_linear(k2, hidden_dim, hidden_dim)
    w3, b3 = _init_linear(k3, hidden_dim, out_dim)
    gamma = jnp.ones((1, out_dim), jnp.float32)   # LayerNorm affine defaults
    beta = jnp.zeros((1, out_dim), jnp.float32)
    return (w1, b1, w2, b2, w3, b3, gamma, beta)


# ----------------------------- main ------------------------------------------ #

if __name__ == "__main__":
    # Small, deterministic example. Feature dims are lane-dense (multiples of
    # 128); hidden/out use the module defaults of 128.  BLOCK_ROWS chosen so
    # the grid length is even (2 steps) -> both v7x TensorCores get work.
    N_ROWS = 512          # e.g. number of nodes/edges fed through the MLP
    IN_DIM = 256
    HIDDEN = 128
    OUT_DIM = 128
    BLOCK_ROWS = 256      # grid = (2,); for large N use the default 1024+

    key = jax.random.PRNGKey(0)
    kx, kp = jax.random.split(key)

    x = jax.random.normal(kx, (N_ROWS, IN_DIM), jnp.float32)
    params = init_mlp(kp, IN_DIM, OUT_DIM, HIDDEN)

    fwd = jax.jit(functools.partial(mlp_forward, block_rows=BLOCK_ROWS))
    y = fwd(x, params)
    jax.block_until_ready(y)

    y_ref = mlp_reference(x, params)
    assert y.shape == (N_ROWS, OUT_DIM)
    assert bool(jnp.all(jnp.isfinite(y)))
    assert jnp.allclose(y, y_ref, rtol=2e-2, atol=2e-2), (
        float(jnp.max(jnp.abs(y - y_ref))))

    # TODO(synk): norm_type other than 'LayerNorm' (GraphNorm/InstanceNorm/
    # BatchNorm/MessageNorm) and use_checkpointing (training-only) not
    # implemented in-kernel.
    print("KERNEL_OK")
</pallas_src>

<mosaic_0001>
module attributes {stable_mosaic.version = 11 : i64} {
  func.func @mlp_ln_kernel(%arg0: i32, %arg1: memref<256x256xf32, #tpu.memory_space<vmem>>, %arg2: memref<256x128xbf16, #tpu.memory_space<vmem>>, %arg3: memref<1x128xf32, #tpu.memory_space<vmem>>, %arg4: memref<128x128xbf16, #tpu.memory_space<vmem>>, %arg5: memref<1x128xf32, #tpu.memory_space<vmem>>, %arg6: memref<128x128xbf16, #tpu.memory_space<vmem>>, %arg7: memref<1x128xf32, #tpu.memory_space<vmem>>, %arg8: memref<1x128xf32, #tpu.memory_space<vmem>>, %arg9: memref<1x128xf32, #tpu.memory_space<vmem>>, %arg10: memref<256x128xf32, #tpu.memory_space<vmem>>) attributes {dimension_semantics = [#tpu.dimension_semantics<parallel>], iteration_bounds = array<i64: 2>, scalar_prefetch = 0 : i64, scratch_operands = 0 : i64, tpu.core_type = #tpu.core_type<tc>, window_params = [{transform_indices = @transform_0, window_bounds = array<i64: 256, 256>}, {pipeline_mode = #tpu.pipeline_mode<synchronous>, transform_indices = @transform_1, window_bounds = array<i64: 256, 128>}, {pipeline_mode = #tpu.pipeline_mode<synchronous>, transform_indices = @transform_2, window_bounds = array<i64: 1, 128>}, {pipeline_mode = #tpu.pipeline_mode<synchronous>, transform_indices = @transform_3, window_bounds = array<i64: 128, 128>}, {pipeline_mode = #tpu.pipeline_mode<synchronous>, transform_indices = @transform_4, window_bounds = array<i64: 1, 128>}, {pipeline_mode = #tpu.pipeline_mode<synchronous>, transform_indices = @transform_5, window_bounds = array<i64: 128, 128>}, {pipeline_mode = #tpu.pipeline_mode<synchronous>, transform_indices = @transform_6, window_bounds = array<i64: 1, 128>}, {pipeline_mode = #tpu.pipeline_mode<synchronous>, transform_indices = @transform_7, window_bounds = array<i64: 1, 128>}, {pipeline_mode = #tpu.pipeline_mode<synchronous>, transform_indices = @transform_8, window_bounds = array<i64: 1, 128>}, {transform_indices = @transform_9, window_bounds = array<i64: 256, 128>}]} {
    %c0 = arith.constant 0 : index
    %c0_0 = arith.constant 0 : index
    %0 = vector.load %arg1[%c0, %c0_0] : memref<256x256xf32, #tpu.memory_space<vmem>>, vector<256x256xf32>
    %1 = arith.truncf %0 : vector<256x256xf32> to vector<256x256xbf16>
    %c0_1 = arith.constant 0 : index
    %c0_2 = arith.constant 0 : index
    %2 = vector.load %arg2[%c0_1, %c0_2] : memref<256x128xbf16, #tpu.memory_space<vmem>>, vector<256x128xbf16>
    %cst = arith.constant dense<0.000000e+00> : vector<256x128xf32>
    %3 = tpu.matmul %1, %2, %cst {dimension_numbers = #tpu.dot_dimension_numbers<[1], [0], [0], [1], [0, 0, 1, 1], [], []>} : vector<256x256xbf16>, vector<256x128xbf16>, vector<256x128xf32> -> vector<256x128xf32>
    %c0_3 = arith.constant 0 : index
    %c0_4 = arith.constant 0 : index
    %4 = vector.load %arg3[%c0_3, %c0_4] : memref<1x128xf32, #tpu.memory_space<vmem>>, vector<1x128xf32>
    %5 = vector.broadcast %4 : vector<1x128xf32> to vector<256x128xf32>
    %6 = arith.addf %3, %5 : vector<256x128xf32>
    %cst_5 = arith.constant 0.000000e+00 : f32
    %7 = vector.broadcast %cst_5 : f32 to vector<256x128xf32>
    %8 = arith.maximumf %6, %7 : vector<256x128xf32>
    %9 = arith.truncf %8 : vector<256x128xf32> to vector<256x128xbf16>
    %c0_6 = arith.constant 0 : index
    %c0_7 = arith.constant 0 : index
    %10 = vector.load %arg4[%c0_6, %c0_7] : memref<128x128xbf16, #tpu.memory_space<vmem>>, vector<128x128xbf16>
    %cst_8 = arith.constant dense<0.000000e+00> : vector<256x128xf32>
    %11 = tpu.matmul %9, %10, %cst_8 {dimension_numbers = #tpu.dot_dimension_numbers<[1], [0], [0], [1], [0, 0, 1, 1], [], []>} : vector<256x128xbf16>, vector<128x128xbf16>, vector<256x128xf32> -> vector<256x128xf32>
    %c0_9 = arith.constant 0 : index
    %c0_10 = arith.constant 0 : index
    %12 = vector.load %arg5[%c0_9, %c0_10] : memref<1x128xf32, #tpu.memory_space<vmem>>, vector<1x128xf32>
    %13 = vector.broadcast %12 : vector<1x128xf32> to vector<256x128xf32>
    %14 = arith.addf %11, %13 : vector<256x128xf32>
    %cst_11 = arith.constant 0.000000e+00 : f32
    %15 = vector.broadcast %cst_11 : f32 to vector<256x128xf32>
    %16 = arith.maximumf %14, %15 : vector<256x128xf32>
    %17 = arith.truncf %16 : vector<256x128xf32> to vector<256x128xbf16>
    %c0_12 = arith.constant 0 : index
    %c0_13 = arith.constant 0 : index
    %18 = vector.load %arg6[%c0_12, %c0_13] : memref<128x128xbf16, #tpu.memory_space<vmem>>, vector<128x128xbf16>
    %cst_14 = arith.constant dense<0.000000e+00> : vector<256x128xf32>
    %19 = tpu.matmul %17, %18, %cst_14 {dimension_numbers = #tpu.dot_dimension_numbers<[1], [0], [0], [1], [0, 0, 1, 1], [], []>} : vector<256x128xbf16>, vector<128x128xbf16>, vector<256x128xf32> -> vector<256x128xf32>
    %c0_15 = arith.constant 0 : index
    %c0_16 = arith.constant 0 : index
    %20 = vector.load %arg7[%c0_15, %c0_16] : memref<1x128xf32, #tpu.memory_space<vmem>>, vector<1x128xf32>
    %21 = vector.broadcast %20 : vector<1x128xf32> to vector<256x128xf32>
    %22 = arith.addf %19, %21 : vector<256x128xf32>
    %cst_17 = arith.constant dense<0.000000e+00> : vector<256xf32>
    %23 = vector.multi_reduction <add>, %22, %cst_17 [1] : vector<256x128xf32> to vector<256xf32>
    %24 = vector.shape_cast %23 : vector<256xf32> to vector<256x1xf32>
    %cst_18 = arith.constant 1.280000e+02 : f32
    %25 = vector.broadcast %cst_18 : f32 to vector<256x1xf32>
    %26 = arith.divf %24, %25 : vector<256x1xf32>
    %27 = vector.broadcast %26 : vector<256x1xf32> to vector<256x128xf32>
    %28 = arith.subf %22, %27 : vector<256x128xf32>
    %29 = arith.mulf %28, %28 : vector<256x128xf32>
    %cst_19 = arith.constant dense<0.000000e+00> : vector<256xf32>
    %30 = vector.multi_reduction <add>, %29, %cst_19 [1] : vector<256x128xf32> to vector<256xf32>
    %31 = vector.shape_cast %30 : vector<256xf32> to vector<256x1xf32>
    %cst_20 = arith.constant 1.280000e+02 : f32
    %32 = vector.broadcast %cst_20 : f32 to vector<256x1xf32>
    %33 = arith.divf %31, %32 : vector<256x1xf32>
    %34 = vector.broadcast %26 : vector<256x1xf32> to vector<256x128xf32>
    %35 = arith.subf %22, %34 : vector<256x128xf32>
    %cst_21 = arith.constant 9.99999974E-6 : f32
    %36 = vector.broadcast %cst_21 : f32 to vector<256x1xf32>
    %37 = arith.addf %33, %36 : vector<256x1xf32>
    %38 = math.rsqrt %37 : vector<256x1xf32>
    %39 = vector.broadcast %38 : vector<256x1xf32> to vector<256x128xf32>
    %40 = arith.mulf %35, %39 : vector<256x128xf32>
    %c0_22 = arith.constant 0 : index
    %c0_23 = arith.constant 0 : index
    %41 = vector.load %arg8[%c0_22, %c0_23] : memref<1x128xf32, #tpu.memory_space<vmem>>, vector<1x128xf32>
    %42 = vector.broadcast %41 : vector<1x128xf32> to vector<256x128xf32>
    %43 = arith.mulf %40, %42 : vector<256x128xf32>
    %c0_24 = arith.constant 0 : index
    %c0_25 = arith.constant 0 : index
    %44 = vector.load %arg9[%c0_24, %c0_25] : memref<1x128xf32, #tpu.memory_space<vmem>>, vector<1x128xf32>
    %45 = vector.broadcast %44 : vector<1x128xf32> to vector<256x128xf32>
    %46 = arith.addf %43, %45 : vector<256x128xf32>
    %c0_26 = arith.constant 0 : index
    %c0_27 = arith.constant 0 : index
    %47 = vector.load %arg10[%c0_26, %c0_27] : memref<256x128xf32, #tpu.memory_space<vmem>>, vector<256x128xf32>
    tpu.vector_store %arg10[%c0_26, %c0_27], %46 {strides = array<i32>} : memref<256x128xf32, #tpu.memory_space<vmem>>, vector<256x128xf32>,
    return
  }
  func.func @transform_0(%arg0: i32) -> (i32, i32) {
    %c0_i32 = arith.constant 0 : i32
    %c0_i32_0 = arith.constant 0 : i32
    return %arg0, %c0_i32 : i32, i32
  }
  func.func @transform_1(%arg0: i32) -> (i32, i32) {
    %c0_i32 = arith.constant 0 : i32
    %c0_i32_0 = arith.constant 0 : i32
    %c0_i32_1 = arith.constant 0 : i32
    return %c0_i32, %c0_i32_0 : i32, i32
  }
  func.func @transform_2(%arg0: i32) -> (i32, i32) {
    %c0_i32 = arith.constant 0 : i32
    %c0_i32_0 = arith.constant 0 : i32
    %c0_i32_1 = arith.constant 0 : i32
    return %c0_i32, %c0_i32_0 : i32, i32
  }
  func.func @transform_3(%arg0: i32) -> (i32, i32) {
    %c0_i32 = arith.constant 0 : i32
    %c0_i32_0 = arith.constant 0 : i32
    %c0_i32_1 = arith.constant 0 : i32
    return %c0_i32, %c0_i32_0 : i32, i32
  }
  func.func @transform_4(%arg0: i32) -> (i32, i32) {
    %c0_i32 = arith.constant 0 : i32
    %c0_i32_0 = arith.constant 0 : i32
    %c0_i32_1 = arith.constant 0 : i32
    return %c0_i32, %c0_i32_0 : i32, i32
  }
  func.func @transform_5(%arg0: i32) -> (i32, i32) {
    %c0_i32 = arith.constant 0 : i32
    %c0_i32_0 = arith.constant 0 : i32
    %c0_i32_1 = arith.constant 0 : i32
    return %c0_i32, %c0_i32_0 : i32, i32
  }
  func.func @transform_6(%arg0: i32) -> (i32, i32) {
    %c0_i32 = arith.constant 0 : i32
    %c0_i32_0 = arith.constant 0 : i32
    %c0_i32_1 = arith.constant 0 : i32
    return %c0_i32, %c0_i32_0 : i32, i32
  }
  func.func @transform_7(%arg0: i32) -> (i32, i32) {
    %c0_i32 = arith.constant 0 : i32
    %c0_i32_0 = arith.constant 0 : i32
    %c0_i32_1 = arith.constant 0 : i32
    return %c0_i32, %c0_i32_0 : i32, i32
  }
  func.func @transform_8(%arg0: i32) -> (i32, i32) {
    %c0_i32 = arith.constant 0 : i32
    %c0_i32_0 = arith.constant 0 : i32
    %c0_i32_1 = arith.constant 0 : i32
    return %c0_i32, %c0_i32_0 : i32, i32
  }
  func.func @transform_9(%arg0: i32) -> (i32, i32) {
    %c0_i32 = arith.constant 0 : i32
    %c0_i32_0 = arith.constant 0 : i32
    return %arg0, %c0_i32 : i32, i32
  }
}

</mosaic_0001>

<llo_original>
// kernel: mlp_forward.1
$region0: #{mlp_forward.1}
  #allocation0 [shape = 'u32[]', space=smem, size = 0x4, offset = 0x4, fixed_abs, tag = 'smem constant byte address 0x4 - core index']
  #allocation1 [shape = 'u32[144,128]{1,0:T(1,128)}', space=vmem, size = 0x12000, scoped, tag = 'internal scratch']
  %s0 = inlined_call_operand.hbm [shape: f32[512,256], index: 0, kind: input, shape index: {}]
  %s1 = inlined_call_operand.hbm [shape: bf16[256,128], index: 1, kind: input, shape index: {}]
  %s2 = inlined_call_operand.vmem [shape: f32[1,128], index: 2, kind: input, shape index: {}]
  %s3 = inlined_call_operand.hbm [shape: bf16[128,128], index: 3, kind: input, shape index: {}]
  %s4 = inlined_call_operand.vmem [shape: f32[1,128], index: 4, kind: input, shape index: {}]
  %s5 = inlined_call_operand.hbm [shape: bf16[128,128], index: 5, kind: input, shape index: {}]
  %s6 = inlined_call_operand.vmem [shape: f32[1,128], index: 6, kind: input, shape index: {}]
  %s7 = inlined_call_operand.vmem [shape: f32[1,128], index: 7, kind: input, shape index: {}]
  %s8 = inlined_call_operand.vmem [shape: f32[1,128], index: 8, kind: input, shape index: {}]
  %s9 = inlined_call_operand.hbm [shape: f32[512,128], index: 9, kind: output, shape index: {}]
  %s10 = sld [smem:[#allocation0]]
  $region85: #{mlp_forward.1} parent=0
    _
  %s12 = ssub.s32 1, %s10
  %s13 = scalar_select 0, %s12, %s10
  $region1: #{mlp_forward.1} parent=0
    #allocation2 [shape = 'u8[524288]{0}', space=vmem, size = 0x80000, scoped, tag = 'input window, operand 0']
    #allocation3 [shape = 's32[2]{0}', space=sflag, size = 0x8, scoped, tag = 'scoped memory for mlp_forward.1']
    #allocation4 [shape = 's32[2]{0}', space=sflag, size = 0x8, scoped, tag = 'scoped memory for mlp_forward.1']
    #allocation5 [shape = 'u8[65536]{0}', space=vmem, size = 0x10000, scoped, tag = 'input window, operand 1, single buffered']
    #allocation6 [shape = 's32[1]{0}', space=sflag, size = 0x4, scoped, tag = 'scoped memory for mlp_forward.1']
    #allocation7 [shape = 'u8[32768]{0}', space=vmem, size = 0x8000, scoped, tag = 'input window, operand 3, single buffered']
    #allocation8 [shape = 'u8[32768]{0}', space=vmem, size = 0x8000, scoped, tag = 'input window, operand 5, single buffered']
    #allocation9 [shape = 's32[1]{0}', space=sflag, size = 0x4, scoped, tag = 'scoped memory for mlp_forward.1']
    #allocation10 [shape = 'u8[262144]{0}', space=vmem, size = 0x40000, scoped, tag = 'output window, operand 0']
    %14 = vsyncpa [#allocation3], 0
    %s15 = scalar_lea.sflag [#allocation3], 1
    %16 = vsyncpa %s15, 0
    %17 = vsyncpa [#allocation6], 0
    %18 = vsyncpa [#allocation9], 0
    %19 = vsyncpa [#allocation4], 0
    %s20 = scalar_lea.sflag [#allocation4], 1
    %21 = vsyncpa %s20, 0
    loop: start=0, step=1, limit=4
    $region2: #{mlp_forward.1} parent=1 // loop_pre_header
      _
    $region3: #{mlp_forward.1} parent=1 // loop_header
      %s23 = sphi 0, %s27
      %p24 = scmp.ge.s32.totalorder %s23, 4
      %s33 = sphi 0, %s35
      %s36 = sphi 0, %s33
      %s37 = sphi 0, %s36
      %s53 = sphi 0, %s37
      %s57 = sphi 0, %s57
      %s59 = sphi 0, %s57
      %s60 = sphi 0, %s59
      %s74 = sphi 0, %s60
      %s78 = sphi 0, %s78
      %s80 = sphi 0, %s78
      %s81 = sphi 0, %s80
      %s95 = sphi 0, %s81
      %s99 = sphi 0, %s99
      %s101 = sphi 0, %s99
      %s102 = sphi 0, %s101
      %s116 = sphi 0, %s102
      %s120 = sphi 0, %s120
      %s122 = sphi 0, %s120
      %s123 = sphi 0, %s122
      %s137 = sphi 0, %s123
      %s141 = sphi 0, %s141
      %s143 = sphi 0, %s141
      %s144 = sphi 0, %s143
      %s158 = sphi 0, %s144
      %s162 = sphi 0, %s162
      %s164 = sphi 0, %s162
      %s165 = sphi 0, %s164
      %s179 = sphi 0, %s165
      %s183 = sphi 0, %s183
      %s185 = sphi 0, %s183
      %s186 = sphi 0, %s185
      %s200 = sphi 0, %s186
      %s204 = sphi 0, %s204
      %s206 = sphi 0, %s204
      %s207 = sphi 0, %s206
      %s221 = sphi 0, %s207
      %s227 = sphi 0, %s229
      %s230 = sphi 0, %s227
      %s231 = sphi 0, %s230
      %s247 = sphi 0, %s231
    $region4: #{mlp_forward.1} parent=1 // loop_header_branch
      %26 = sbr.rel (%p24) target = $region8
    $region5: #{mlp_forward.1} parent=1 // loop_body
      %s28 = ssub.s32 %s23, 1
      %s29 = ssub.s32 %s23, 2
      %s30 = sadd.s32 %s23, 1
      %s31 = ssub.s32 %s23, %s30
      %p32 = scmp.eq.s32.totalorder %s31, 0
      %s34 = sadd.s32 %s33, 1
      %s35 = scalar_select %p32, %s33, %s34
      %p38 = pneg %p32
      %p39 = scmp.eq.s32.totalorder %s23, 1
      %p40 = por %p38, %p39
      %p41 = scmp.ne.s32.totalorder %s33, %s36
      %p42 = scmp.eq.s32.totalorder %s23, 0
      %p43 = por %p41, %p42
      %p44 = scmp.ne.s32.totalorder %s33, %s36
      %p45 = scmp.eq.s32.totalorder %s28, 1
      %p46 = por %p44, %p45
      %p47 = scmp.ne.s32.totalorder %s36, %s37
      %p48 = scmp.eq.s32.totalorder %s28, 0
      %p49 = por %p47, %p48
      %p50 = scmp.ne.s32.totalorder %s36, %s37
      %p51 = scmp.eq.s32.totalorder %s29, 1
      %p52 = por %p50, %p51
      %p54 = scmp.ne.s32.totalorder %s37, %s53
      %p55 = scmp.eq.s32.totalorder %s29, 0
      %p56 = por %p54, %p55
      %s58 = sadd.s32 %s57, 1
      %p61 = scmp.eq.s32.totalorder %s23, 1
      %p62 = scmp.ne.s32.totalorder %s57, %s59
      %p63 = scmp.eq.s32.totalorder %s23, 0
      %p64 = por %p62, %p63
      %p65 = scmp.ne.s32.totalorder %s57, %s59
      %p66 = scmp.eq.s32.totalorder %s28, 1
      %p67 = por %p65, %p66
      %p68 = scmp.ne.s32.totalorder %s59, %s60
      %p69 = scmp.eq.s32.totalorder %s28, 0
      %p70 = por %p68, %p69
      %p71 = scmp.ne.s32.totalorder %s59, %s60
      %p72 = scmp.eq.s32.totalorder %s29, 1
      %p73 = por %p71, %p72
      %p75 = scmp.ne.s32.totalorder %s60, %s74
      %p76 = scmp.eq.s32.totalorder %s29, 0
      %p77 = por %p75, %p76
      %s79 = sadd.s32 %s78, 1
      %p82 = scmp.eq.s32.totalorder %s23, 1
      %p83 = scmp.ne.s32.totalorder %s78, %s80
      %p84 = scmp.eq.s32.totalorder %s23, 0
      %p85 = por %p83, %p84
      %p86 = scmp.ne.s32.totalorder %s78, %s80
      %p87 = scmp.eq.s32.totalorder %s28, 1
      %p88 = por %p86, %p87
      %p89 = scmp.ne.s32.totalorder %s80, %s81
      %p90 = scmp.eq.s32.totalorder %s28, 0
      %p91 = por %p89, %p90
      %p92 = scmp.ne.s32.totalorder %s80, %s81
      %p93 = scmp.eq.s32.totalorder %s29, 1
      %p94 = por %p92, %p93
      %p96 = scmp.ne.s32.totalorder %s81, %s95
      %p97 = scmp.eq.s32.totalorder %s29, 0
      %p98 = por %p96, %p97
      %s100 = sadd.s32 %s99, 1
      %p103 = scmp.eq.s32.totalorder %s23, 1
      %p104 = scmp.ne.s32.totalorder %s99, %s101
      %p105 = scmp.eq.s32.totalorder %s23, 0
      %p106 = por %p104, %p105
      %p107 = scmp.ne.s32.totalorder %s99, %s101
      %p108 = scmp.eq.s32.totalorder %s28, 1
      %p109 = por %p107, %p108
      %p110 = scmp.ne.s32.totalorder %s101, %s102
      %p111 = scmp.eq.s32.totalorder %s28, 0
      %p112 = por %p110, %p111
      %p113 = scmp.ne.s32.totalorder %s101, %s102
      %p114 = scmp.eq.s32.totalorder %s29, 1
      %p115 = por %p113, %p114
      %p117 = scmp.ne.s32.totalorder %s102, %s116
      %p118 = scmp.eq.s32.totalorder %s29, 0
      %p119 = por %p117, %p118
      %s121 = sadd.s32 %s120, 1
      %p124 = scmp.eq.s32.totalorder %s23, 1
      %p125 = scmp.ne.s32.totalorder %s120, %s122
      %p126 = scmp.eq.s32.totalorder %s23, 0
      %p127 = por %p125, %p126
      %p128 = scmp.ne.s32.totalorder %s120, %s122
      %p129 = scmp.eq.s32.totalorder %s28, 1
      %p130 = por %p128, %p129
      %p131 = scmp.ne.s32.totalorder %s122, %s123
      %p132 = scmp.eq.s32.totalorder %s28, 0
      %p133 = por %p131, %p132
      %p134 = scmp.ne.s32.totalorder %s122, %s123
      %p135 = scmp.eq.s32.totalorder %s29, 1
      %p136 = por %p134, %p135
      %p138 = scmp.ne.s32.totalorder %s123, %s137
      %p139 = scmp.eq.s32.totalorder %s29, 0
      %p140 = por %p138, %p139
      %s142 = sadd.s32 %s141, 1
      %p145 = scmp.eq.s32.totalorder %s23, 1
      %p146 = scmp.ne.s32.totalorder %s141, %s143
      %p147 = scmp.eq.s32.totalorder %s23, 0
      %p148 = por %p146, %p147
      %p149 = scmp.ne.s32.totalorder %s141, %s143
      %p150 = scmp.eq.s32.totalorder %s28, 1
      %p151 = por %p149, %p150
      %p152 = scmp.ne.s32.totalorder %s143, %s144
      %p153 = scmp.eq.s32.totalorder %s28, 0
      %p154 = por %p152, %p153
      %p155 = scmp.ne.s32.totalorder %s143, %s144
      %p156 = scmp.eq.s32.totalorder %s29, 1
      %p157 = por %p155, %p156
      %p159 = scmp.ne.s32.totalorder %s144, %s158
      %p160 = scmp.eq.s32.totalorder %s29, 0
      %p161 = por %p159, %p160
      %s163 = sadd.s32 %s162, 1
      %p166 = scmp.eq.s32.totalorder %s23, 1
      %p167 = scmp.ne.s32.totalorder %s162, %s164
      %p168 = scmp.eq.s32.totalorder %s23, 0
      %p169 = por %p167, %p168
      %p170 = scmp.ne.s32.totalorder %s162, %s164
      %p171 = scmp.eq.s32.totalorder %s28, 1
      %p172 = por %p170, %p171
      %p173 = scmp.ne.s32.totalorder %s164, %s165
      %p174 = scmp.eq.s32.totalorder %s28, 0
      %p175 = por %p173, %p174
      %p176 = scmp.ne.s32.totalorder %s164, %s165
      %p177 = scmp.eq.s32.totalorder %s29, 1
      %p178 = por %p176, %p177
      %p180 = scmp.ne.s32.totalorder %s165, %s179
      %p181 = scmp.eq.s32.totalorder %s29, 0
      %p182 = por %p180, %p181
      %s184 = sadd.s32 %s183, 1
      %p187 = scmp.eq.s32.totalorder %s23, 1
      %p188 = scmp.ne.s32.totalorder %s183, %s185
      %p189 = scmp.eq.s32.totalorder %s23, 0
      %p190 = por %p188, %p189
      %p191 = scmp.ne.s32.totalorder %s183, %s185
      %p192 = scmp.eq.s32.totalorder %s28, 1
      %p193 = por %p191, %p192
      %p194 = scmp.ne.s32.totalorder %s185, %s186
      %p195 = scmp.eq.s32.totalorder %s28, 0
      %p196 = por %p194, %p195
      %p197 = scmp.ne.s32.totalorder %s185, %s186
      %p198 = scmp.eq.s32.totalorder %s29, 1
      %p199 = por %p197, %p198
      %p201 = scmp.ne.s32.totalorder %s186, %s200
      %p202 = scmp.eq.s32.totalorder %s29, 0
      %p203 = por %p201, %p202
      %s205 = sadd.s32 %s204, 1
      %p208 = scmp.eq.s32.totalorder %s23, 1
      %p209 = scmp.ne.s32.totalorder %s204, %s206
      %p210 = scmp.eq.s32.totalorder %s23, 0
      %p211 = por %p209, %p210
      %p212 = scmp.ne.s32.totalorder %s204, %s206
      %p213 = scmp.eq.s32.totalorder %s28, 1
      %p214 = por %p212, %p213
      %p215 = scmp.ne.s32.totalorder %s206, %s207
      %p216 = scmp.eq.s32.totalorder %s28, 0
      %p217 = por %p215, %p216
      %p218 = scmp.ne.s32.totalorder %s206, %s207
      %p219 = scmp.eq.s32.totalorder %s29, 1
      %p220 = por %p218, %p219
      %p222 = scmp.ne.s32.totalorder %s207, %s221
      %p223 = scmp.eq.s32.totalorder %s29, 0
      %p224 = por %p222, %p223
      %s225 = ssub.s32 %s23, %s30
      %p226 = scmp.eq.s32.totalorder %s225, 0
      %s228 = sadd.s32 %s227, 1
      %s229 = scalar_select %p226, %s227, %s228
      %p232 = pneg %p226
      %p233 = scmp.eq.s32.totalorder %s23, 1
      %p234 = por %p232, %p233
      %p235 = scmp.ne.s32.totalorder %s227, %s230
      %p236 = scmp.eq.s32.totalorder %s23, 0
      %p237 = por %p235, %p236
      %p238 = scmp.ne.s32.totalorder %s227, %s230
      %p239 = scmp.eq.s32.totalorder %s28, 1
      %p240 = por %p238, %p239
      %p241 = scmp.ne.s32.totalorder %s230, %s231
      %p242 = scmp.eq.s32.totalorder %s28, 0
      %p243 = por %p241, %p242
      %p244 = scmp.ne.s32.totalorder %s230, %s231
      %p245 = scmp.eq.s32.totalorder %s29, 1
      %p246 = por %p244, %p245
      %p248 = scmp.ne.s32.totalorder %s231, %s247
      %p249 = scmp.eq.s32.totalorder %s29, 0
      %p250 = por %p248, %p249
      %p251 = scmp.le.s32.totalorder 1, %s23
      %p252 = scmp.lt.s32.totalorder %s23, 3
      %p253 = pnand %p251, %p252
      %p254 = pneg %p253
      // Predicated region
      $region9: #{mlp_forward.1} parent=5 // pred_check
        _
      $region10: #{mlp_forward.1} parent=5 // pred_check_branch
        %256 = sbr.rel (%p253) target = $region12
      $region11: #{mlp_forward.1} parent=5 // pred_region
        %s257 = ssub.s32 %s23, 1
        // Predicated region
        $region13: #{mlp_forward.1} parent=11 // pred_check
          %p258 = pneg %p70
        $region14: #{mlp_forward.1} parent=11 // pred_check_branch
          %260 = sbr.rel (%p258) target = $region16
        $region15: #{mlp_forward.1} parent=11 // pred_region
          %s262 = ssub.s32 2048, 2048
          %263 = vsyncadd [#allocation6], %s262
          %s264 = sshll.u32 [#allocation5], 4
          %s265 = int_to_ptr.vmem [resolvable:$true] %s264
          %270 = dma.hbm_to_vmem [thread:$0]  %s1, 2048, %s265, [#allocation6], 64, 64, 4
        $region16: #{mlp_forward.1} parent=11 // pred_fallthru
          _
        // Predicated region
        $region17: #{mlp_forward.1} parent=11 // pred_check
          %p271 = pneg %p91
        $region18: #{mlp_forward.1} parent=11 // pred_check_branch
          %273 = sbr.rel (%p271) target = $region20
        $region19: #{mlp_forward.1} parent=11 // pred_region
          _
        $region20: #{mlp_forward.1} parent=11 // pred_fallthru
          _
        // Predicated region
        $region21: #{mlp_forward.1} parent=11 // pred_check
          %p274 = pneg %p112
        $region22: #{mlp_forward.1} parent=11 // pred_check_branch
          %276 = sbr.rel (%p274) target = $region24
        $region23: #{mlp_forward.1} parent=11 // pred_region
          %s278 = ssub.s32 1024, 1024
          %279 = vsyncadd [#allocation6], %s278
          %s280 = sshll.u32 [#allocation7], 4
          %s281 = int_to_ptr.vmem [resolvable:$true] %s280
          %286 = dma.hbm_to_vmem [thread:$0]  %s3, 1024, %s281, [#allocation6], 64, 64, 4
        $region24: #{mlp_forward.1} parent=11 // pred_fallthru
          _
        // Predicated region
        $region25: #{mlp_forward.1} parent=11 // pred_check
          %p287 = pneg %p133
        $region26: #{mlp_forward.1} parent=11 // pred_check_branch
          %289 = sbr.rel (%p287) target = $region28
        $region27: #{mlp_forward.1} parent=11 // pred_region
          _
        $region28: #{mlp_forward.1} parent=11 // pred_fallthru
          _
        // Predicated region
        $region29: #{mlp_forward.1} parent=11 // pred_check
          %p290 = pneg %p154
        $region30: #{mlp_forward.1} parent=11 // pred_check_branch
          %292 = sbr.rel (%p290) target = $region32
        $region31: #{mlp_forward.1} parent=11 // pred_region
          %s294 = ssub.s32 1024, 1024
          %295 = vsyncadd [#allocation9], %s294
          %s296 = sshll.u32 [#allocation8], 4
          %s297 = int_to_ptr.vmem [resolvable:$true] %s296
          %302 = dma.hbm_to_vmem [thread:$0]  %s5, 1024, %s297, [#allocation9], 64, 64, 4
        $region32: #{mlp_forward.1} parent=11 // pred_fallthru
          _
        // Predicated region
        $region33: #{mlp_forward.1} parent=11 // pred_check
          %p303 = pneg %p175
        $region34: #{mlp_forward.1} parent=11 // pred_check_branch
          %305 = sbr.rel (%p303) target = $region36
        $region35: #{mlp_forward.1} parent=11 // pred_region
          _
        $region36: #{mlp_forward.1} parent=11 // pred_fallthru
          _
        // Predicated region
        $region37: #{mlp_forward.1} parent=11 // pred_check
          %p306 = pneg %p196
        $region38: #{mlp_forward.1} parent=11 // pred_check_branch
          %308 = sbr.rel (%p306) target = $region40
        $region39: #{mlp_forward.1} parent=11 // pred_region
          _
        $region40: #{mlp_forward.1} parent=11 // pred_fallthru
          _
        // Predicated region
        $region41: #{mlp_forward.1} parent=11 // pred_check
          %p309 = pneg %p217
        $region42: #{mlp_forward.1} parent=11 // pred_check_branch
          %311 = sbr.rel (%p309) target = $region44
        $region43: #{mlp_forward.1} parent=11 // pred_region
          _
        $region44: #{mlp_forward.1} parent=11 // pred_fallthru
          _
      $region12: #{mlp_forward.1} parent=5 // pred_fallthru
        _
      %p312 = scmp.lt.s32.totalorder %s23, 2
      // Predicated region
      $region45: #{mlp_forward.1} parent=5 // pred_check
        %p313 = pneg %p312
      $region46: #{mlp_forward.1} parent=5 // pred_check_branch
        %315 = sbr.rel (%p313) target = $region48
      $region47: #{mlp_forward.1} parent=5 // pred_region
        // Predicated region
        $region49: #{mlp_forward.1} parent=47 // pred_check
          %p316 = pneg %p43
        $region50: #{mlp_forward.1} parent=47 // pred_check_branch
          %318 = sbr.rel (%p316) target = $region52
        $region51: #{mlp_forward.1} parent=47 // pred_region
          %s319 = sand.u32 %s33, 1
          %s320 = scalar_lea.sflag [#allocation3], %s319
          %s321 = sand.u32 %s33, 1
          %s322 = smul.addr %s321, 512
          %s323 = scalar_lea.vmem [#allocation2], %s322
          %s324 = smul.u32 32, %s23
          %s326 = ssub.s32 8192, 8192
          %327 = vsyncadd %s320, %s326
          %s328 = smul.addr %s324, 2
          %s329 = smul.addr %s328, 128
          %s330 = scalar_lea.hbm %s0, %s329
          %s331 = sshll.u32 %s323, 4
          %s332 = int_to_ptr.vmem [resolvable:$true] %s331
          %337 = dma.hbm_to_vmem [thread:$0]  %s330, 8192, %s332, %s320, 256, 256, 16
        $region52: #{mlp_forward.1} parent=47 // pred_fallthru
          _
      $region48: #{mlp_forward.1} parent=5 // pred_fallthru
        _
      %p338 = scmp.le.s32.totalorder 1, %s23
      %p339 = scmp.lt.s32.totalorder %s23, 3
      %p340 = pnand %p338, %p339
      %p341 = pneg %p340
      // Predicated region
      $region53: #{mlp_forward.1} parent=5 // pred_check
        _
      $region54: #{mlp_forward.1} parent=5 // pred_check_branch
        %343 = sbr.rel (%p340) target = $region56
      $region55: #{mlp_forward.1} parent=5 // pred_region
        %s344 = ssub.s32 %s23, 1
        %s345 = sand.u32 %s36, 1
        %s346 = scalar_lea.sflag [#allocation3], %s345
        %s347 = sand.u32 %s36, 1
        %s348 = smul.addr %s347, 512
        %s349 = scalar_lea.vmem [#allocation2], %s348
        // Predicated region
        $region57: #{mlp_forward.1} parent=55 // pred_check
          %p350 = pneg %p49
        $region58: #{mlp_forward.1} parent=55 // pred_check_branch
          %352 = sbr.rel (%p350) target = $region60
        $region59: #{mlp_forward.1} parent=55 // pred_region
          %353 = dma.done %s346, 8192
        $region60: #{mlp_forward.1} parent=55 // pred_fallthru
          _
        // Predicated region
        $region61: #{mlp_forward.1} parent=55 // pred_check
          %p354 = pneg %p70
        $region62: #{mlp_forward.1} parent=55 // pred_check_branch
          %356 = sbr.rel (%p354) target = $region64
        $region63: #{mlp_forward.1} parent=55 // pred_region
          %357 = dma.done [#allocation6], 2048
        $region64: #{mlp_forward.1} parent=55 // pred_fallthru
          _
        // Predicated region
        $region65: #{mlp_forward.1} parent=55 // pred_check
          %p358 = pneg %p112
        $region66: #{mlp_forward.1} parent=55 // pred_check_branch
          %360 = sbr.rel (%p358) target = $region68
        $region67: #{mlp_forward.1} parent=55 // pred_region
          %361 = dma.done [#allocation6], 1024
        $region68: #{mlp_forward.1} parent=55 // pred_fallthru
          _
        // Predicated region
        $region69: #{mlp_forward.1} parent=55 // pred_check
          %p362 = pneg %p154
        $region70: #{mlp_forward.1} parent=55 // pred_check_branch
          %364 = sbr.rel (%p362) target = $region72
        $region71: #{mlp_forward.1} parent=55 // pred_region
          %365 = dma.done [#allocation9], 1024
        $region72: #{mlp_forward.1} parent=55 // pred_fallthru
          _
        %s366 = sand.u32 %s36, 1
        %s367 = scalar_lea.sflag [#allocation3], %s366
        %s368 = sand.u32 %s36, 1
        %s369 = smul.addr %s368, 512
        %s370 = scalar_lea.vmem [#allocation2], %s369
        %p371 = pneg %p49
        %p372 = pneg %p46
        %p373 = pneg %p70
        %p374 = pneg %p67
        %p375 = pneg %p91
        %p376 = pneg %p88
        %p377 = pneg %p112
        %p378 = pneg %p109
        %p379 = pneg %p133
        %p380 = pneg %p130
        %p381 = pneg %p154
        %p382 = pneg %p151
        %p383 = pneg %p175
        %p384 = pneg %p172
        %p385 = pneg %p196
        %p386 = pneg %p193
        %p387 = pneg %p217
        %p388 = pneg %p214
        %p389 = pneg %p243
        %p390 = pneg %p240
        %s391 = sand.u32 %s230, 1
        %s392 = scalar_lea.sflag [#allocation4], %s391
        %s393 = sand.u32 %s230, 1
        %s394 = smul.addr %s393, 256
        %s395 = scalar_lea.vmem [#allocation10], %s394
        %s396 = smul.u32 32, %s28
        %s397 = smul.u32 32, %s28
        %v399 = vld [vmem:[%s349] sm:$0xff]
        %v400 = vld [vmem:[%s349 + $0x8] sm:$0xff]
        %v401 = vld [vmem:[%s349 + $0x10] sm:$0xff]
        %v402 = vld [vmem:[%s349 + $0x18] sm:$0xff]
        %v403 = vld [vmem:[%s349 + $0x20] sm:$0xff]
        %v404 = vld [vmem:[%s349 + $0x28] sm:$0xff]
        %v405 = vld [vmem:[%s349 + $0x30] sm:$0xff]
        %v406 = vld [vmem:[%s349 + $0x38] sm:$0xff]
        %v407 = vld [vmem:[%s349 + $0x40] sm:$0xff]
        %v408 = vld [vmem:[%s349 + $0x48] sm:$0xff]
        %v409 = vld [vmem:[%s349 + $0x50] sm:$0xff]
        %v410 = vld [vmem:[%s349 + $0x58] sm:$0xff]
        %v411 = vld [vmem:[%s349 + $0x60] sm:$0xff]
        %v412 = vld [vmem:[%s349 + $0x68] sm:$0xff]
        %v413 = vld [vmem:[%s349 + $0x70] sm:$0xff]
        %v414 = vld [vmem:[%s349 + $0x78] sm:$0xff]
        %v415 = vld [vmem:[%s349 + $0x80] sm:$0xff]
        %v416 = vld [vmem:[%s349 + $0x88] sm:$0xff]
        %v417 = vld [vmem:[%s349 + $0x90] sm:$0xff]
        %v418 = vld [vmem:[%s349 + $0x98] sm:$0xff]
        %v419 = vld [vmem:[%s349 + $0xa0] sm:$0xff]
        %v420 = vld [vmem:[%s349 + $0xa8] sm:$0xff]
        %v421 = vld [vmem:[%s349 + $0xb0] sm:$0xff]
        %v422 = vld [vmem:[%s349 + $0xb8] sm:$0xff]
        %v423 = vld [vmem:[%s349 + $0xc0] sm:$0xff]
        %v424 = vld [vmem:[%s349 + $0xc8] sm:$0xff]
        %v425 = vld [vmem:[%s349 + $0xd0] sm:$0xff]
        %v426 = vld [vmem:[%s349 + $0xd8] sm:$0xff]
        %v427 = vld [vmem:[%s349 + $0xe0] sm:$0xff]
        %v428 = vld [vmem:[%s349 + $0xe8] sm:$0xff]
        %v429 = vld [vmem:[%s349 + $0xf0] sm:$0xff]
        %v430 = vld [vmem:[%s349 + $0xf8] sm:$0xff]
        %v431 = vld [vmem:[%s349 + $0x100] sm:$0xff]
        %v432 = vld [vmem:[%s349 + $0x108] sm:$0xff]
        %v433 = vld [vmem:[%s349 + $0x110] sm:$0xff]
        %v434 = vld [vmem:[%s349 + $0x118] sm:$0xff]
        %v435 = vld [vmem:[%s349 + $0x120] sm:$0xff]
        %v436 = vld [vmem:[%s349 + $0x128] sm:$0xff]
        %v437 = vld [vmem:[%s349 + $0x130] sm:$0xff]
        %v438 = vld [vmem:[%s349 + $0x138] sm:$0xff]
        %v439 = vld [vmem:[%s349 + $0x140] sm:$0xff]
        %v440 = vld [vmem:[%s349 + $0x148] sm:$0xff]
        %v441 = vld [vmem:[%s349 + $0x150] sm:$0xff]
        %v442 = vld [vmem:[%s349 + $0x158] sm:$0xff]
        %v443 = vld [vmem:[%s349 + $0x160] sm:$0xff]
        %v444 = vld [vmem:[%s349 + $0x168] sm:$0xff]
        %v445 = vld [vmem:[%s349 + $0x170] sm:$0xff]
        %v446 = vld [vmem:[%s349 + $0x178] sm:$0xff]
        %v447 = vld [vmem:[%s349 + $0x180] sm:$0xff]
        %v448 = vld [vmem:[%s349 + $0x188] sm:$0xff]
        %v449 = vld [vmem:[%s349 + $0x190] sm:$0xff]
        %v450 = vld [vmem:[%s349 + $0x198] sm:$0xff]
        %v451 = vld [vmem:[%s349 + $0x1a0] sm:$0xff]
        %v452 = vld [vmem:[%s349 + $0x1a8] sm:$0xff]
        %v453 = vld [vmem:[%s349 + $0x1b0] sm:$0xff]
        %v454 = vld [vmem:[%s349 + $0x1b8] sm:$0xff]
        %v455 = vld [vmem:[%s349 + $0x1c0] sm:$0xff]
        %v456 = vld [vmem:[%s349 + $0x1c8] sm:$0xff]
        %v457 = vld [vmem:[%s349 + $0x1d0] sm:$0xff]
        %v458 = vld [vmem:[%s349 + $0x1d8] sm:$0xff]
        %v459 = vld [vmem:[%s349 + $0x1e0] sm:$0xff]
        %v460 = vld [vmem:[%s349 + $0x1e8] sm:$0xff]
        %v461 = vld [vmem:[%s349 + $0x1f0] sm:$0xff]
        %v462 = vld [vmem:[%s349 + $0x1f8] sm:$0xff]
        %v463 = vpack.c.bf16 %v401, %v399
        %v464 = vpack.c.bf16 %v402, %v400
        %v465 = vpack.c.bf16 %v405, %v403
        %v466 = vpack.c.bf16 %v406, %v404
        %v467 = vpack.c.bf16 %v409, %v407
        %v468 = vpack.c.bf16 %v410, %v408
        %v469 = vpack.c.bf16 %v413, %v411
        %v470 = vpack.c.bf16 %v414, %v412
        %v471 = vpack.c.bf16 %v417, %v415
        %v472 = vpack.c.bf16 %v418, %v416
        %v473 = vpack.c.bf16 %v421, %v419
        %v474 = vpack.c.bf16 %v422, %v420
        %v475 = vpack.c.bf16 %v425, %v423
        %v476 = vpack.c.bf16 %v426, %v424
        %v477 = vpack.c.bf16 %v429, %v427
        %v478 = vpack.c.bf16 %v430, %v428
        %v479 = vpack.c.bf16 %v433, %v431
        %v480 = vpack.c.bf16 %v434, %v432
        %v481 = vpack.c.bf16 %v437, %v435
        %v482 = vpack.c.bf16 %v438, %v436
        %v483 = vpack.c.bf16 %v441, %v439
        %v484 = vpack.c.bf16 %v442, %v440
        %v485 = vpack.c.bf16 %v445, %v443
        %v486 = vpack.c.bf16 %v446, %v444
        %v487 = vpack.c.bf16 %v449, %v447
        %v488 = vpack.c.bf16 %v450, %v448
        %v489 = vpack.c.bf16 %v453, %v451
        %v490 = vpack.c.bf16 %v454, %v452
        %v491 = vpack.c.bf16 %v457, %v455
        %v492 = vpack.c.bf16 %v458, %v456
        %v493 = vpack.c.bf16 %v461, %v459
        %v494 = vpack.c.bf16 %v462, %v460
        %v495 = vld [vmem:[#allocation5] sm:$0xf]
        %v496 = vld [vmem:[#allocation5 + $0x4] sm:$0xf]
        %v497 = vld [vmem:[#allocation5 + $0x8] sm:$0xf]
        %v498 = vld [vmem:[#allocation5 + $0xc] sm:$0xf]
        %v499 = vld [vmem:[#allocation5 + $0x10] sm:$0xf]
        %v500 = vld [vmem:[#allocation5 + $0x14] sm:$0xf]
        %v501 = vld [vmem:[#allocation5 + $0x18] sm:$0xf]
        %v502 = vld [vmem:[#allocation5 + $0x1c] sm:$0xf]
        %v503 = vld [vmem:[#allocation5 + $0x20] sm:$0xf]
        %v504 = vld [vmem:[#allocation5 + $0x24] sm:$0xf]
        %v505 = vld [vmem:[#allocation5 + $0x28] sm:$0xf]
        %v506 = vld [vmem:[#allocation5 + $0x2c] sm:$0xf]
        %v507 = vld [vmem:[#allocation5 + $0x30] sm:$0xf]
        %v508 = vld [vmem:[#allocation5 + $0x34] sm:$0xf]
        %v509 = vld [vmem:[#allocation5 + $0x38] sm:$0xf]
        %v510 = vld [vmem:[#allocation5 + $0x3c] sm:$0xf]
        %v511 = vld [vmem:[#allocation5 + $0x40] sm:$0xf]
        %v512 = vld [vmem:[#allocation5 + $0x44] sm:$0xf]
        %v513 = vld [vmem:[#allocation5 + $0x48] sm:$0xf]
        %v514 = vld [vmem:[#allocation5 + $0x4c] sm:$0xf]
        %v515 = vld [vmem:[#allocation5 + $0x50] sm:$0xf]
        %v516 = vld [vmem:[#allocation5 + $0x54] sm:$0xf]
        %v517 = vld [vmem:[#allocation5 + $0x58] sm:$0xf]
        %v518 = vld [vmem:[#allocation5 + $0x5c] sm:$0xf]
        %v519 = vld [vmem:[#allocation5 + $0x60] sm:$0xf]
        %v520 = vld [vmem:[#allocation5 + $0x64] sm:$0xf]
        %v521 = vld [vmem:[#allocation5 + $0x68] sm:$0xf]
        %v522 = vld [vmem:[#allocation5 + $0x6c] sm:$0xf]
        %v523 = vld [vmem:[#allocation5 + $0x70] sm:$0xf]
        %v524 = vld [vmem:[#allocation5 + $0x74] sm:$0xf]
        %v525 = vld [vmem:[#allocation5 + $0x78] sm:$0xf]
        %v526 = vld [vmem:[#allocation5 + $0x7c] sm:$0xf]
        %v527 = vld [vmem:[%s2] sm:$0x1]
        %v529 = vlaneseq
        %v530 = vshrl.u32 %v529, 7
        %v531 = vsub.s32 0, %v530
        %v532 = vrot.slane %v527, %v531
        %v566 = vunpack.c.l.b16 %v495
        %v567 = vunpack.c.l.b16 %v496
        %v568 = vunpack.c.l.b16 %v497
        %v569 = vunpack.c.l.b16 %v498
        %v570 = vunpack.c.l.b16 %v499
        %v571 = vunpack.c.l.b16 %v500
        %v572 = vunpack.c.l.b16 %v501
        %v573 = vunpack.c.l.b16 %v502
        %v574 = vunpack.c.l.b16 %v503
        %v575 = vunpack.c.l.b16 %v504
        %v576 = vunpack.c.l.b16 %v505
        %v577 = vunpack.c.l.b16 %v506
        %v578 = vunpack.c.l.b16 %v507
        %v579 = vunpack.c.l.b16 %v508
        %v580 = vunpack.c.l.b16 %v509
        %v581 = vunpack.c.l.b16 %v510
        %v582 = vunpack.c.l.b16 %v511
        %v583 = vunpack.c.l.b16 %v512
        %v584 = vunpack.c.l.b16 %v513
        %v585 = vunpack.c.l.b16 %v514
        %v586 = vunpack.c.l.b16 %v515
        %v587 = vunpack.c.l.b16 %v516
        %v588 = vunpack.c.l.b16 %v517
        %v589 = vunpack.c.l.b16 %v518
        %v590 = vunpack.c.l.b16 %v519
        %v591 = vunpack.c.l.b16 %v520
        %v592 = vunpack.c.l.b16 %v521
        %v593 = vunpack.c.l.b16 %v522
        %v594 = vunpack.c.l.b16 %v523
        %v595 = vunpack.c.l.b16 %v524
        %v596 = vunpack.c.l.b16 %v525
        %v597 = vunpack.c.l.b16 %v526
        %v598 = vpack.c.b16 %v567, %v566
        %v599 = vpack.c.b16 %v569, %v568
        %v600 = vpack.c.b16 %v571, %v570
        %v601 = vpack.c.b16 %v573, %v572
        %v602 = vpack.c.b16 %v575, %v574
        %v603 = vpack.c.b16 %v577, %v576
        %v604 = vpack.c.b16 %v579, %v578
        %v605 = vpack.c.b16 %v581, %v580
        %v606 = vpack.c.b16 %v583, %v582
        %v607 = vpack.c.b16 %v585, %v584
        %v608 = vpack.c.b16 %v587, %v586
        %v609 = vpack.c.b16 %v589, %v588
        %v610 = vpack.c.b16 %v591, %v590
        %v611 = vpack.c.b16 %v593, %v592
        %v612 = vpack.c.b16 %v595, %v594
        %v613 = vpack.c.b16 %v597, %v596
        %630 = vmatprep.subr.bf16.mxu0 0
        %631 = vmatpush1.bf16.msra.mxu0 %v605
        %632 = vmatprep.subr.bf16.mxu0 0
        %633 = vmatpush1.bf16.msra.mxu0 %v604
        %634 = vmatprep.subr.bf16.mxu0 0
        %635 = vmatpush1.bf16.msra.mxu0 %v603
        %636 = vmatprep.subr.bf16.mxu0 0
        %637 = vmatpush1.bf16.msra.mxu0 %v602
        %638 = vmatprep.subr.bf16.mxu0 0
        %639 = vmatpush1.bf16.msra.mxu0 %v601
        %640 = vmatprep.subr.bf16.mxu0 0
        %641 = vmatpush1.bf16.msra.mxu0 %v600
        %642 = vmatprep.subr.bf16.mxu0 0
        %643 = vmatpush1.bf16.msra.mxu0 %v599
        %644 = vmatprep.subr.bf16.mxu0 0
        %645 = vmatpush1.bf16.msra.mxu0 %v598
        %646 = vmatprep.subr.bf16.mxu0 0
        %647 = vmatpush2.bf16.msra.mxu0 %v613
        %648 = vmatprep.subr.bf16.mxu0 0
        %649 = vmatpush2.bf16.msra.mxu0 %v612
        %650 = vmatprep.subr.bf16.mxu0 0
        %651 = vmatpush2.bf16.msra.mxu0 %v611
        %652 = vmatprep.subr.bf16.mxu0 0
        %653 = vmatpush2.bf16.msra.mxu0 %v610
        %654 = vmatprep.subr.bf16.mxu0 0
        %655 = vmatpush2.bf16.msra.mxu0 %v609
        %656 = vmatprep.subr.bf16.mxu0 0
        %657 = vmatpush2.bf16.msra.mxu0 %v608
        %658 = vmatprep.subr.bf16.mxu0 0
        %659 = vmatpush2.bf16.msra.mxu0 %v607
        %660 = vmatprep.subr.bf16.mxu0 0
        %661 = vmatpush2.bf16.msra.mxu0 %v606
        %662 = vmatprep.mubr.bf16.mxu0 %v464
        %663 = vmatmul.mubr.bf16.gmra.mxu0 %v463
        %v664 = vpop.f32.mrf.mxu0
        %v665 = vadd.f32 %v532, %v664
        %v666 = vpop.f32.mrf.mxu0
        %v667 = vpop.f32.mrf.mxu0
        %v668 = vadd.f32 %v532, %v667
        %v669 = vpop.f32.mrf.mxu0
        %670 = vmatprep.mubr.bf16.mxu0 %v466
        %671 = vmatmul.mubr.bf16.gmra.mxu0 %v465
        %v672 = vpop.f32.mrf.mxu0
        %v673 = vadd.f32 %v532, %v672
        %v674 = vpop.f32.mrf.mxu0
        %v675 = vpop.f32.mrf.mxu0
        %v676 = vadd.f32 %v532, %v675
        %v677 = vpop.f32.mrf.mxu0
        %678 = vmatprep.mubr.bf16.mxu0 %v468
        %679 = vmatmul.mubr.bf16.gmra.mxu0 %v467
        %v680 = vpop.f32.mrf.mxu0
        %v681 = vadd.f32 %v532, %v680
        %v682 = vpop.f32.mrf.mxu0
        %v683 = vpop.f32.mrf.mxu0
        %v684 = vadd.f32 %v532, %v683
        %v685 = vpop.f32.mrf.mxu0
        %686 = vmatprep.mubr.bf16.mxu0 %v470
        %687 = vmatmul.mubr.bf16.gmra.mxu0 %v469
        %v688 = vpop.f32.mrf.mxu0
        %v689 = vadd.f32 %v532, %v688
        %v690 = vpop.f32.mrf.mxu0
        %v691 = vpop.f32.mrf.mxu0
        %v692 = vadd.f32 %v532, %v691
        %v693 = vpop.f32.mrf.mxu0
        %694 = vmatprep.mubr.bf16.mxu0 %v472
        %695 = vmatmul.mubr.bf16.gmra.mxu0 %v471
        %v696 = vpop.f32.mrf.mxu0
        %v697 = vadd.f32 %v532, %v696
        %v698 = vpop.f32.mrf.mxu0
        %v699 = vpop.f32.mrf.mxu0
        %v700 = vadd.f32 %v532, %v699
        %v701 = vpop.f32.mrf.mxu0
        %702 = vmatprep.mubr.bf16.mxu0 %v474
        %703 = vmatmul.mubr.bf16.gmra.mxu0 %v473
        %v704 = vpop.f32.mrf.mxu0
        %v705 = vadd.f32 %v532, %v704
        %v706 = vpop.f32.mrf.mxu0
        %v707 = vpop.f32.mrf.mxu0
        %v708 = vadd.f32 %v532, %v707
        %v709 = vpop.f32.mrf.mxu0
        %710 = vmatprep.mubr.bf16.mxu0 %v476
        %711 = vmatmul.mubr.bf16.gmra.mxu0 %v475
        %v712 = vpop.f32.mrf.mxu0
        %v713 = vadd.f32 %v532, %v712
        %v714 = vpop.f32.mrf.mxu0
        %v715 = vpop.f32.mrf.mxu0
        %v716 = vadd.f32 %v532, %v715
        %v717 = vpop.f32.mrf.mxu0
        %718 = vmatprep.mubr.bf16.mxu0 %v478
        %719 = vmatmul.mubr.bf16.gmra.mxu0 %v477
        %v720 = vpop.f32.mrf.mxu0
        %v721 = vadd.f32 %v532, %v720
        %v722 = vpop.f32.mrf.mxu0
        %v723 = vpop.f32.mrf.mxu0
        %v724 = vadd.f32 %v532, %v723
        %v725 = vpop.f32.mrf.mxu0
        %726 = vmatprep.mubr.bf16.mxu0 %v480
        %727 = vmatmul.mubr.bf16.gmra.mxu0 %v479
        %v728 = vpop.f32.mrf.mxu0
        %v729 = vadd.f32 %v532, %v728
        %v730 = vpop.f32.mrf.mxu0
        %v731 = vpop.f32.mrf.mxu0
        %v732 = vadd.f32 %v532, %v731
        %v733 = vpop.f32.mrf.mxu0
        %734 = vmatprep.mubr.bf16.mxu0 %v482
        %735 = vmatmul.mubr.bf16.gmra.mxu0 %v481
        %v736 = vpop.f32.mrf.mxu0
        %v737 = vadd.f32 %v532, %v736
        %v738 = vpop.f32.mrf.mxu0
        %v739 = vpop.f32.mrf.mxu0
        %v740 = vadd.f32 %v532, %v739
        %v741 = vpop.f32.mrf.mxu0
        %742 = vmatprep.mubr.bf16.mxu0 %v484
        %743 = vmatmul.mubr.bf16.gmra.mxu0 %v483
        %v744 = vpop.f32.mrf.mxu0
        %v745 = vadd.f32 %v532, %v744
        %v746 = vpop.f32.mrf.mxu0
        %v747 = vpop.f32.mrf.mxu0
        %v748 = vadd.f32 %v532, %v747
        %v749 = vpop.f32.mrf.mxu0
        %750 = vmatprep.mubr.bf16.mxu0 %v486
        %751 = vmatmul.mubr.bf16.gmra.mxu0 %v485
        %v752 = vpop.f32.mrf.mxu0
        %v753 = vadd.f32 %v532, %v752
        %v754 = vpop.f32.mrf.mxu0
        %v755 = vpop.f32.mrf.mxu0
        %v756 = vadd.f32 %v532, %v755
        %v757 = vpop.f32.mrf.mxu0
        %758 = vmatprep.mubr.bf16.mxu0 %v488
        %759 = vmatmul.mubr.bf16.gmra.mxu0 %v487
        %v760 = vpop.f32.mrf.mxu0
        %v761 = vadd.f32 %v532, %v760
        %v762 = vpop.f32.mrf.mxu0
        %v763 = vpop.f32.mrf.mxu0
        %v764 = vadd.f32 %v532, %v763
        %v765 = vpop.f32.mrf.mxu0
        %766 = vmatprep.mubr.bf16.mxu0 %v490
        %767 = vmatmul.mubr.bf16.gmra.mxu0 %v489
        %v768 = vpop.f32.mrf.mxu0
        %v769 = vadd.f32 %v532, %v768
        %v770 = vpop.f32.mrf.mxu0
        %v771 = vpop.f32.mrf.mxu0
        %v772 = vadd.f32 %v532, %v771
        %v773 = vpop.f32.mrf.mxu0
        %774 = vmatprep.mubr.bf16.mxu0 %v492
        %775 = vmatmul.mubr.bf16.gmra.mxu0 %v491
        %v776 = vpop.f32.mrf.mxu0
        %v777 = vadd.f32 %v532, %v776
        %v778 = vpop.f32.mrf.mxu0
        %v779 = vpop.f32.mrf.mxu0
        %v780 = vadd.f32 %v532, %v779
        %v781 = vpop.f32.mrf.mxu0
        %782 = vmatprep.mubr.bf16.mxu0 %v494
        %783 = vmatmul.mubr.bf16.gmra.mxu0 %v493
        %v784 = vpop.f32.mrf.mxu0
        %v785 = vadd.f32 %v532, %v784
        %v786 = vpop.f32.mrf.mxu0
        %v787 = vpop.f32.mrf.mxu0
        %v788 = vadd.f32 %v532, %v787
        %v789 = vpop.f32.mrf.mxu0
        %790 = vdwg.mxu0
        %v791 = vmax.f32 %v665, 0.0
        %v792 = vmax.f32 %v668, 0.0
        %v793 = vmax.f32 %v673, 0.0
        %v794 = vmax.f32 %v676, 0.0
        %v795 = vmax.f32 %v681, 0.0
        %v796 = vmax.f32 %v684, 0.0
        %v797 = vmax.f32 %v689, 0.0
        %v798 = vmax.f32 %v692, 0.0
        %v799 = vmax.f32 %v697, 0.0
        %v800 = vmax.f32 %v700, 0.0
        %v801 = vmax.f32 %v705, 0.0
        %v802 = vmax.f32 %v708, 0.0
        %v803 = vmax.f32 %v713, 0.0
        %v804 = vmax.f32 %v716, 0.0
        %v805 = vmax.f32 %v721, 0.0
        %v806 = vmax.f32 %v724, 0.0
        %v807 = vmax.f32 %v729, 0.0
        %v808 = vmax.f32 %v732, 0.0
        %v809 = vmax.f32 %v737, 0.0
        %v810 = vmax.f32 %v740, 0.0
        %v811 = vmax.f32 %v745, 0.0
        %v812 = vmax.f32 %v748, 0.0
        %v813 = vmax.f32 %v753, 0.0
        %v814 = vmax.f32 %v756, 0.0
        %v815 = vmax.f32 %v761, 0.0
        %v816 = vmax.f32 %v764, 0.0
        %v817 = vmax.f32 %v769, 0.0
        %v818 = vmax.f32 %v772, 0.0
        %v819 = vmax.f32 %v777, 0.0
        %v820 = vmax.f32 %v780, 0.0
        %v821 = vmax.f32 %v785, 0.0
        %v822 = vmax.f32 %v788, 0.0
        %v823 = vpack.c.bf16 %v792, %v791
        %v824 = vpack.c.bf16 %v794, %v793
        %v825 = vpack.c.bf16 %v796, %v795
        %v826 = vpack.c.bf16 %v798, %v797
        %v827 = vpack.c.bf16 %v800, %v799
        %v828 = vpack.c.bf16 %v802, %v801
        %v829 = vpack.c.bf16 %v804, %v803
        %v830 = vpack.c.bf16 %v806, %v805
        %v831 = vpack.c.bf16 %v808, %v807
        %v832 = vpack.c.bf16 %v810, %v809
        %v833 = vpack.c.bf16 %v812, %v811
        %v834 = vpack.c.bf16 %v814, %v813
        %v835 = vpack.c.bf16 %v816, %v815
        %v836 = vpack.c.bf16 %v818, %v817
        %v837 = vpack.c.bf16 %v820, %v819
        %v838 = vpack.c.bf16 %v822, %v821
        %v839 = vld [vmem:[#allocation7] sm:$0xf]
        %v840 = vld [vmem:[#allocation7 + $0x4] sm:$0xf]
        %v841 = vld [vmem:[#allocation7 + $0x8] sm:$0xf]
        %v842 = vld [vmem:[#allocation7 + $0xc] sm:$0xf]
        %v843 = vld [vmem:[#allocation7 + $0x10] sm:$0xf]
        %v844 = vld [vmem:[#allocation7 + $0x14] sm:$0xf]
        %v845 = vld [vmem:[#allocation7 + $0x18] sm:$0xf]
        %v846 = vld [vmem:[#allocation7 + $0x1c] sm:$0xf]
        %v847 = vld [vmem:[#allocation7 + $0x20] sm:$0xf]
        %v848 = vld [vmem:[#allocation7 + $0x24] sm:$0xf]
        %v849 = vld [vmem:[#allocation7 + $0x28] sm:$0xf]
        %v850 = vld [vmem:[#allocation7 + $0x2c] sm:$0xf]
        %v851 = vld [vmem:[#allocation7 + $0x30] sm:$0xf]
        %v852 = vld [vmem:[#allocation7 + $0x34] sm:$0xf]
        %v853 = vld [vmem:[#allocation7 + $0x38] sm:$0xf]
        %v854 = vld [vmem:[#allocation7 + $0x3c] sm:$0xf]
        %v855 = vld [vmem:[%s4] sm:$0x1]
        %v857 = vlaneseq
        %v858 = vshrl.u32 %v857, 7
        %v859 = vsub.s32 0, %v858
        %v860 = vrot.slane %v855, %v859
        %v878 = vunpack.c.l.b16 %v839
        %v879 = vunpack.c.l.b16 %v840
        %v880 = vunpack.c.l.b16 %v841
        %v881 = vunpack.c.l.b16 %v842
        %v882 = vunpack.c.l.b16 %v843
        %v883 = vunpack.c.l.b16 %v844
        %v884 = vunpack.c.l.b16 %v845
        %v885 = vunpack.c.l.b16 %v846
        %v886 = vunpack.c.l.b16 %v847
        %v887 = vunpack.c.l.b16 %v848
        %v888 = vunpack.c.l.b16 %v849
        %v889 = vunpack.c.l.b16 %v850
        %v890 = vunpack.c.l.b16 %v851
        %v891 = vunpack.c.l.b16 %v852
        %v892 = vunpack.c.l.b16 %v853
        %v893 = vunpack.c.l.b16 %v854
        %v894 = vpack.c.b16 %v879, %v878
        %v895 = vpack.c.b16 %v881, %v880
        %v896 = vpack.c.b16 %v883, %v882
        %v897 = vpack.c.b16 %v885, %v884
        %v898 = vpack.c.b16 %v887, %v886
        %v899 = vpack.c.b16 %v889, %v888
        %v900 = vpack.c.b16 %v891, %v890
        %v901 = vpack.c.b16 %v893, %v892
        %910 = vmatprep.subr.bf16.mxu0 0
        %911 = vmatpush1.bf16.msra.mxu0 %v901
        %912 = vmatprep.subr.bf16.mxu0 0
        %913 = vmatpush1.bf16.msra.mxu0 %v900
        %914 = vmatprep.subr.bf16.mxu0 0
        %915 = vmatpush1.bf16.msra.mxu0 %v899
        %916 = vmatprep.subr.bf16.mxu0 0
        %917 = vmatpush1.bf16.msra.mxu0 %v898
        %918 = vmatprep.subr.bf16.mxu0 0
        %919 = vmatpush1.bf16.msra.mxu0 %v897
        %920 = vmatprep.subr.bf16.mxu0 0
        %921 = vmatpush1.bf16.msra.mxu0 %v896
        %922 = vmatprep.subr.bf16.mxu0 0
        %923 = vmatpush1.bf16.msra.mxu0 %v895
        %924 = vmatprep.subr.bf16.mxu0 0
        %925 = vmatpush1.bf16.msra.mxu0 %v894
        %926 = vmatprep.subr.bf16.mxu0 0
        %927 = vmatpush2.bf16.msra.mxu0 0
        %928 = vmatprep.subr.bf16.mxu0 0
        %929 = vmatpush2.bf16.msra.mxu0 0
        %930 = vmatprep.subr.bf16.mxu0 0
        %931 = vmatpush2.bf16.msra.mxu0 0
        %932 = vmatprep.subr.bf16.mxu0 0
        %933 = vmatpush2.bf16.msra.mxu0 0
        %934 = vmatprep.subr.bf16.mxu0 0
        %935 = vmatpush2.bf16.msra.mxu0 0
        %936 = vmatprep.subr.bf16.mxu0 0
        %937 = vmatpush2.bf16.msra.mxu0 0
        %938 = vmatprep.subr.bf16.mxu0 0
        %939 = vmatpush2.bf16.msra.mxu0 0
        %940 = vmatprep.subr.bf16.mxu0 0
        %941 = vmatpush2.bf16.msra.mxu0 0
        %942 = vmatprep.mubr.bf16.mxu0 0
        %943 = vmatmul.mubr.bf16.gmra.mxu0 %v823
        %v944 = vpop.f32.mrf.mxu0
        %v945 = vadd.f32 %v860, %v944
        %v946 = vpop.f32.mrf.mxu0
        %v947 = vpop.f32.mrf.mxu0
        %v948 = vadd.f32 %v860, %v947
        %v949 = vpop.f32.mrf.mxu0
        %950 = vmatprep.mubr.bf16.mxu0 0
        %951 = vmatmul.mubr.bf16.gmra.mxu0 %v824
        %v952 = vpop.f32.mrf.mxu0
        %v953 = vadd.f32 %v860, %v952
        %v954 = vpop.f32.mrf.mxu0
        %v955 = vpop.f32.mrf.mxu0
        %v956 = vadd.f32 %v860, %v955
        %v957 = vpop.f32.mrf.mxu0
        %958 = vmatprep.mubr.bf16.mxu0 0
        %959 = vmatmul.mubr.bf16.gmra.mxu0 %v825
        %v960 = vpop.f32.mrf.mxu0
        %v961 = vadd.f32 %v860, %v960
        %v962 = vpop.f32.mrf.mxu0
        %v963 = vpop.f32.mrf.mxu0
        %v964 = vadd.f32 %v860, %v963
        %v965 = vpop.f32.mrf.mxu0
        %966 = vmatprep.mubr.bf16.mxu0 0
        %967 = vmatmul.mubr.bf16.gmra.mxu0 %v826
        %v968 = vpop.f32.mrf.mxu0
        %v969 = vadd.f32 %v860, %v968
        %v970 = vpop.f32.mrf.mxu0
        %v971 = vpop.f32.mrf.mxu0
        %v972 = vadd.f32 %v860, %v971
        %v973 = vpop.f32.mrf.mxu0
        %974 = vmatprep.mubr.bf16.mxu0 0
        %975 = vmatmul.mubr.bf16.gmra.mxu0 %v827
        %v976 = vpop.f32.mrf.mxu0
        %v977 = vadd.f32 %v860, %v976
        %v978 = vpop.f32.mrf.mxu0
        %v979 = vpop.f32.mrf.mxu0
        %v980 = vadd.f32 %v860, %v979
        %v981 = vpop.f32.mrf.mxu0
        %982 = vmatprep.mubr.bf16.mxu0 0
        %983 = vmatmul.mubr.bf16.gmra.mxu0 %v828
        %v984 = vpop.f32.mrf.mxu0
        %v985 = vadd.f32 %v860, %v984
        %v986 = vpop.f32.mrf.mxu0
        %v987 = vpop.f32.mrf.mxu0
        %v988 = vadd.f32 %v860, %v987
        %v989 = vpop.f32.mrf.mxu0
        %990 = vmatprep.mubr.bf16.mxu0 0
        %991 = vmatmul.mubr.bf16.gmra.mxu0 %v829
        %v992 = vpop.f32.mrf.mxu0
        %v993 = vadd.f32 %v860, %v992
        %v994 = vpop.f32.mrf.mxu0
        %v995 = vpop.f32.mrf.mxu0
        %v996 = vadd.f32 %v860, %v995
        %v997 = vpop.f32.mrf.mxu0
        %998 = vmatprep.mubr.bf16.mxu0 0
        %999 = vmatmul.mubr.bf16.gmra.mxu0 %v830
        %v1000 = vpop.f32.mrf.mxu0
        %v1001 = vadd.f32 %v860, %v1000
        %v1002 = vpop.f32.mrf.mxu0
        %v1003 = vpop.f32.mrf.mxu0
        %v1004 = vadd.f32 %v860, %v1003
        %v1005 = vpop.f32.mrf.mxu0
        %1006 = vmatprep.mubr.bf16.mxu0 0
        %1007 = vmatmul.mubr.bf16.gmra.mxu0 %v831
        %v1008 = vpop.f32.mrf.mxu0
        %v1009 = vadd.f32 %v860, %v1008
        %v1010 = vpop.f32.mrf.mxu0
        %v1011 = vpop.f32.mrf.mxu0
        %v1012 = vadd.f32 %v860, %v1011
        %v1013 = vpop.f32.mrf.mxu0
        %1014 = vmatprep.mubr.bf16.mxu0 0
        %1015 = vmatmul.mubr.bf16.gmra.mxu0 %v832
        %v1016 = vpop.f32.mrf.mxu0
        %v1017 = vadd.f32 %v860, %v1016
        %v1018 = vpop.f32.mrf.mxu0
        %v1019 = vpop.f32.mrf.mxu0
        %v1020 = vadd.f32 %v860, %v1019
        %v1021 = vpop.f32.mrf.mxu0
        %1022 = vmatprep.mubr.bf16.mxu0 0
        %1023 = vmatmul.mubr.bf16.gmra.mxu0 %v833
        %v1024 = vpop.f32.mrf.mxu0
        %v1025 = vadd.f32 %v860, %v1024
        %v1026 = vpop.f32.mrf.mxu0
        %v1027 = vpop.f32.mrf.mxu0
        %v1028 = vadd.f32 %v860, %v1027
        %v1029 = vpop.f32.mrf.mxu0
        %1030 = vmatprep.mubr.bf16.mxu0 0
        %1031 = vmatmul.mubr.bf16.gmra.mxu0 %v834
        %v1032 = vpop.f32.mrf.mxu0
        %v1033 = vadd.f32 %v860, %v1032
        %v1034 = vpop.f32.mrf.mxu0
        %v1035 = vpop.f32.mrf.mxu0
        %v1036 = vadd.f32 %v860, %v1035
        %v1037 = vpop.f32.mrf.mxu0
        %1038 = vmatprep.mubr.bf16.mxu0 0
        %1039 = vmatmul.mubr.bf16.gmra.mxu0 %v835
        %v1040 = vpop.f32.mrf.mxu0
        %v1041 = vadd.f32 %v860, %v1040
        %v1042 = vpop.f32.mrf.mxu0
        %v1043 = vpop.f32.mrf.mxu0
        %v1044 = vadd.f32 %v860, %v1043
        %v1045 = vpop.f32.mrf.mxu0
        %1046 = vmatprep.mubr.bf16.mxu0 0
        %1047 = vmatmul.mubr.bf16.gmra.mxu0 %v836
        %v1048 = vpop.f32.mrf.mxu0
        %v1049 = vadd.f32 %v860, %v1048
        %v1050 = vpop.f32.mrf.mxu0
        %v1051 = vpop.f32.mrf.mxu0
        %v1052 = vadd.f32 %v860, %v1051
        %v1053 = vpop.f32.mrf.mxu0
        %1054 = vmatprep.mubr.bf16.mxu0 0
        %1055 = vmatmul.mubr.bf16.gmra.mxu0 %v837
        %v1056 = vpop.f32.mrf.mxu0
        %v1057 = vadd.f32 %v860, %v1056
        %v1058 = vpop.f32.mrf.mxu0
        %v1059 = vpop.f32.mrf.mxu0
        %v1060 = vadd.f32 %v860, %v1059
        %v1061 = vpop.f32.mrf.mxu0
        %1062 = vmatprep.mubr.bf16.mxu0 0
        %1063 = vmatmul.mubr.bf16.gmra.mxu0 %v838
        %v1064 = vpop.f32.mrf.mxu0
        %v1065 = vadd.f32 %v860, %v1064
        %v1066 = vpop.f32.mrf.mxu0
        %v1067 = vpop.f32.mrf.mxu0
        %v1068 = vadd.f32 %v860, %v1067
        %v1069 = vpop.f32.mrf.mxu0
        %1070 = vdwg.mxu0
        %v1071 = vmax.f32 %v945, 0.0
        %v1072 = vmax.f32 %v948, 0.0
        %v1073 = vmax.f32 %v953, 0.0
        %v1074 = vmax.f32 %v956, 0.0
        %v1075 = vmax.f32 %v961, 0.0
        %v1076 = vmax.f32 %v964, 0.0
        %v1077 = vmax.f32 %v969, 0.0
        %v1078 = vmax.f32 %v972, 0.0
        %v1079 = vmax.f32 %v977, 0.0
        %v1080 = vmax.f32 %v980, 0.0
        %v1081 = vmax.f32 %v985, 0.0
        %v1082 = vmax.f32 %v988, 0.0
        %v1083 = vmax.f32 %v993, 0.0
        %v1084 = vmax.f32 %v996, 0.0
        %v1085 = vmax.f32 %v1001, 0.0
        %v1086 = vmax.f32 %v1004, 0.0
        %v1087 = vmax.f32 %v1009, 0.0
        %v1088 = vmax.f32 %v1012, 0.0
        %v1089 = vmax.f32 %v1017, 0.0
        %v1090 = vmax.f32 %v1020, 0.0
        %v1091 = vmax.f32 %v1025, 0.0
        %v1092 = vmax.f32 %v1028, 0.0
        %v1093 = vmax.f32 %v1033, 0.0
        %v1094 = vmax.f32 %v1036, 0.0
        %v1095 = vmax.f32 %v1041, 0.0
        %v1096 = vmax.f32 %v1044, 0.0
        %v1097 = vmax.f32 %v1049, 0.0
        %v1098 = vmax.f32 %v1052, 0.0
        %v1099 = vmax.f32 %v1057, 0.0
        %v1100 = vmax.f32 %v1060, 0.0
        %v1101 = vmax.f32 %v1065, 0.0
        %v1102 = vmax.f32 %v1068, 0.0
        %v1103 = vpack.c.bf16 %v1072, %v1071
        %v1104 = vpack.c.bf16 %v1074, %v1073
        %v1105 = vpack.c.bf16 %v1076, %v1075
        %v1106 = vpack.c.bf16 %v1078, %v1077
        %v1107 = vpack.c.bf16 %v1080, %v1079
        %v1108 = vpack.c.bf16 %v1082, %v1081
        %v1109 = vpack.c.bf16 %v1084, %v1083
        %v1110 = vpack.c.bf16 %v1086, %v1085
        %v1111 = vpack.c.bf16 %v1088, %v1087
        %v1112 = vpack.c.bf16 %v1090, %v1089
        %v1113 = vpack.c.bf16 %v1092, %v1091
        %v1114 = vpack.c.bf16 %v1094, %v1093
        %v1115 = vpack.c.bf16 %v1096, %v1095
        %v1116 = vpack.c.bf16 %v1098, %v1097
        %v1117 = vpack.c.bf16 %v1100, %v1099
        %v1118 = vpack.c.bf16 %v1102, %v1101
        %v1119 = vld [vmem:[#allocation8] sm:$0xf]
        %v1120 = vld [vmem:[#allocation8 + $0x4] sm:$0xf]
        %v1121 = vld [vmem:[#allocation8 + $0x8] sm:$0xf]
        %v1122 = vld [vmem:[#allocation8 + $0xc] sm:$0xf]
        %v1123 = vld [vmem:[#allocation8 + $0x10] sm:$0xf]
        %v1124 = vld [vmem:[#allocation8 + $0x14] sm:$0xf]
        %v1125 = vld [vmem:[#allocation8 + $0x18] sm:$0xf]
        %v1126 = vld [vmem:[#allocation8 + $0x1c] sm:$0xf]
        %v1127 = vld [vmem:[#allocation8 + $0x20] sm:$0xf]
        %v1128 = vld [vmem:[#allocation8 + $0x24] sm:$0xf]
        %v1129 = vld [vmem:[#allocation8 + $0x28] sm:$0xf]
        %v1130 = vld [vmem:[#allocation8 + $0x2c] sm:$0xf]
        %v1131 = vld [vmem:[#allocation8 + $0x30] sm:$0xf]
        %v1132 = vld [vmem:[#allocation8 + $0x34] sm:$0xf]
        %v1133 = vld [vmem:[#allocation8 + $0x38] sm:$0xf]
        %v1134 = vld [vmem:[#allocation8 + $0x3c] sm:$0xf]
        %v1135 = vld [vmem:[%s6] sm:$0x1]
        %v1137 = vlaneseq
        %v1138 = vshrl.u32 %v1137, 7
        %v1139 = vsub.s32 0, %v1138
        %v1140 = vrot.slane %v1135, %v1139
        %v1158 = vunpack.c.l.b16 %v1119
        %v1159 = vunpack.c.l.b16 %v1120
        %v1160 = vunpack.c.l.b16 %v1121
        %v1161 = vunpack.c.l.b16 %v1122
        %v1162 = vunpack.c.l.b16 %v1123
        %v1163 = vunpack.c.l.b16 %v1124
        %v1164 = vunpack.c.l.b16 %v1125
        %v1165 = vunpack.c.l.b16 %v1126
        %v1166 = vunpack.c.l.b16 %v1127
        %v1167 = vunpack.c.l.b16 %v1128
        %v1168 = vunpack.c.l.b16 %v1129
        %v1169 = vunpack.c.l.b16 %v1130
        %v1170 = vunpack.c.l.b16 %v1131
        %v1171 = vunpack.c.l.b16 %v1132
        %v1172 = vunpack.c.l.b16 %v1133
        %v1173 = vunpack.c.l.b16 %v1134
        %v1174 = vpack.c.b16 %v1159, %v1158
        %v1175 = vpack.c.b16 %v1161, %v1160
        %v1176 = vpack.c.b16 %v1163, %v1162
        %v1177 = vpack.c.b16 %v1165, %v1164
        %v1178 = vpack.c.b16 %v1167, %v1166
        %v1179 = vpack.c.b16 %v1169, %v1168
        %v1180 = vpack.c.b16 %v1171, %v1170
        %v1181 = vpack.c.b16 %v1173, %v1172
        %1190 = vmatprep.subr.bf16.mxu0 0
        %1191 = vmatpush1.bf16.msra.mxu0 %v1181
        %1192 = vmatprep.subr.bf16.mxu0 0
        %1193 = vmatpush1.bf16.msra.mxu0 %v1180
        %1194 = vmatprep.subr.bf16.mxu0 0
        %1195 = vmatpush1.bf16.msra.mxu0 %v1179
        %1196 = vmatprep.subr.bf16.mxu0 0
        %1197 = vmatpush1.bf16.msra.mxu0 %v1178
        %1198 = vmatprep.subr.bf16.mxu0 0
        %1199 = vmatpush1.bf16.msra.mxu0 %v1177
        %1200 = vmatprep.subr.bf16.mxu0 0
        %1201 = vmatpush1.bf16.msra.mxu0 %v1176
        %1202 = vmatprep.subr.bf16.mxu0 0
        %1203 = vmatpush1.bf16.msra.mxu0 %v1175
        %1204 = vmatprep.subr.bf16.mxu0 0
        %1205 = vmatpush1.bf16.msra.mxu0 %v1174
        %1206 = vmatprep.subr.bf16.mxu0 0
        %1207 = vmatpush2.bf16.msra.mxu0 0
        %1208 = vmatprep.subr.bf16.mxu0 0
        %1209 = vmatpush2.bf16.msra.mxu0 0
        %1210 = vmatprep.subr.bf16.mxu0 0
        %1211 = vmatpush2.bf16.msra.mxu0 0
        %1212 = vmatprep.subr.bf16.mxu0 0
        %1213 = vmatpush2.bf16.msra.mxu0 0
        %1214 = vmatprep.subr.bf16.mxu0 0
        %1215 = vmatpush2.bf16.msra.mxu0 0
        %1216 = vmatprep.subr.bf16.mxu0 0
        %1217 = vmatpush2.bf16.msra.mxu0 0
        %1218 = vmatprep.subr.bf16.mxu0 0
        %1219 = vmatpush2.bf16.msra.mxu0 0
        %1220 = vmatprep.subr.bf16.mxu0 0
        %1221 = vmatpush2.bf16.msra.mxu0 0
        %1222 = vmatprep.mubr.bf16.mxu0 0
        %1223 = vmatmul.mubr.bf16.gmra.mxu0 %v1103
        %v1224 = vpop.f32.mrf.mxu0
        %v1225 = vadd.f32 %v1140, %v1224
        %v1226 = vpop.f32.mrf.mxu0
        %v1227 = vpop.f32.mrf.mxu0
        %v1228 = vadd.f32 %v1140, %v1227
        %v1229 = vpop.f32.mrf.mxu0
        %1230 = vmatprep.mubr.bf16.mxu0 0
        %1231 = vmatmul.mubr.bf16.gmra.mxu0 %v1104
        %v1232 = vpop.f32.mrf.mxu0
        %v1233 = vadd.f32 %v1140, %v1232
        %v1234 = vpop.f32.mrf.mxu0
        %v1235 = vpop.f32.mrf.mxu0
        %v1236 = vadd.f32 %v1140, %v1235
        %v1237 = vpop.f32.mrf.mxu0
        %1238 = vmatprep.mubr.bf16.mxu0 0
        %1239 = vmatmul.mubr.bf16.gmra.mxu0 %v1105
        %v1240 = vpop.f32.mrf.mxu0
        %v1241 = vadd.f32 %v1140, %v1240
        %v1242 = vpop.f32.mrf.mxu0
        %v1243 = vpop.f32.mrf.mxu0
        %v1244 = vadd.f32 %v1140, %v1243
        %v1245 = vpop.f32.mrf.mxu0
        %1246 = vmatprep.mubr.bf16.mxu0 0
        %1247 = vmatmul.mubr.bf16.gmra.mxu0 %v1106
        %v1248 = vpop.f32.mrf.mxu0
        %v1249 = vadd.f32 %v1140, %v1248
        %v1250 = vpop.f32.mrf.mxu0
        %v1251 = vpop.f32.mrf.mxu0
        %v1252 = vadd.f32 %v1140, %v1251
        %v1253 = vpop.f32.mrf.mxu0
        %1254 = vmatprep.mubr.bf16.mxu0 0
        %1255 = vmatmul.mubr.bf16.gmra.mxu0 %v1107
        %v1256 = vpop.f32.mrf.mxu0
        %v1257 = vadd.f32 %v1140, %v1256
        %v1258 = vpop.f32.mrf.mxu0
        %v1259 = vpop.f32.mrf.mxu0
        %v1260 = vadd.f32 %v1140, %v1259
        %v1261 = vpop.f32.mrf.mxu0
        %1262 = vmatprep.mubr.bf16.mxu0 0
        %1263 = vmatmul.mubr.bf16.gmra.mxu0 %v1108
        %v1264 = vpop.f32.mrf.mxu0
        %v1265 = vadd.f32 %v1140, %v1264
        %v1266 = vpop.f32.mrf.mxu0
        %v1267 = vpop.f32.mrf.mxu0
        %v1268 = vadd.f32 %v1140, %v1267
        %v1269 = vpop.f32.mrf.mxu0
        %1270 = vmatprep.mubr.bf16.mxu0 0
        %1271 = vmatmul.mubr.bf16.gmra.mxu0 %v1109
        %v1272 = vpop.f32.mrf.mxu0
        %v1273 = vadd.f32 %v1140, %v1272
        %v1274 = vpop.f32.mrf.mxu0
        %v1275 = vpop.f32.mrf.mxu0
        %v1276 = vadd.f32 %v1140, %v1275
        %v1277 = vpop.f32.mrf.mxu0
        %1278 = vmatprep.mubr.bf16.mxu0 0
        %1279 = vmatmul.mubr.bf16.gmra.mxu0 %v1110
        %v1280 = vpop.f32.mrf.mxu0
        %v1281 = vadd.f32 %v1140, %v1280
        %v1282 = vpop.f32.mrf.mxu0
        %v1283 = vpop.f32.mrf.mxu0
        %v1284 = vadd.f32 %v1140, %v1283
        %v1285 = vpop.f32.mrf.mxu0
        %1286 = vmatprep.mubr.bf16.mxu0 0
        %1287 = vmatmul.mubr.bf16.gmra.mxu0 %v1111
        %v1288 = vpop.f32.mrf.mxu0
        %v1289 = vadd.f32 %v1140, %v1288
        %v1290 = vpop.f32.mrf.mxu0
        %v1291 = vpop.f32.mrf.mxu0
        %v1292 = vadd.f32 %v1140, %v1291
        %v1293 = vpop.f32.mrf.mxu0
        %1294 = vmatprep.mubr.bf16.mxu0 0
        %1295 = vmatmul.mubr.bf16.gmra.mxu0 %v1112
        %v1296 = vpop.f32.mrf.mxu0
        %v1297 = vadd.f32 %v1140, %v1296
        %v1298 = vpop.f32.mrf.mxu0
        %v1299 = vpop.f32.mrf.mxu0
        %v1300 = vadd.f32 %v1140, %v1299
        %v1301 = vpop.f32.mrf.mxu0
        %1302 = vmatprep.mubr.bf16.mxu0 0
        %1303 = vmatmul.mubr.bf16.gmra.mxu0 %v1113
        %v1304 = vpop.f32.mrf.mxu0
        %v1305 = vadd.f32 %v1140, %v1304
        %v1306 = vpop.f32.mrf.mxu0
        %v1307 = vpop.f32.mrf.mxu0
        %v1308 = vadd.f32 %v1140, %v1307
        %v1309 = vpop.f32.mrf.mxu0
        %1310 = vmatprep.mubr.bf16.mxu0 0
        %1311 = vmatmul.mubr.bf16.gmra.mxu0 %v1114
        %v1312 = vpop.f32.mrf.mxu0
        %v1313 = vadd.f32 %v1140, %v1312
        %v1314 = vpop.f32.mrf.mxu0
        %v1315 = vpop.f32.mrf.mxu0
        %v1316 = vadd.f32 %v1140, %v1315
        %v1317 = vpop.f32.mrf.mxu0
        %1318 = vmatprep.mubr.bf16.mxu0 0
        %1319 = vmatmul.mubr.bf16.gmra.mxu0 %v1115
        %v1320 = vpop.f32.mrf.mxu0
        %v1321 = vadd.f32 %v1140, %v1320
        %v1322 = vpop.f32.mrf.mxu0
        %v1323 = vpop.f32.mrf.mxu0
        %v1324 = vadd.f32 %v1140, %v1323
        %v1325 = vpop.f32.mrf.mxu0
        %1326 = vmatprep.mubr.bf16.mxu0 0
        %1327 = vmatmul.mubr.bf16.gmra.mxu0 %v1116
        %v1328 = vpop.f32.mrf.mxu0
        %v1329 = vadd.f32 %v1140, %v1328
        %v1330 = vpop.f32.mrf.mxu0
        %v1331 = vpop.f32.mrf.mxu0
        %v1332 = vadd.f32 %v1140, %v1331
        %v1333 = vpop.f32.mrf.mxu0
        %1334 = vmatprep.mubr.bf16.mxu0 0
        %1335 = vmatmul.mubr.bf16.gmra.mxu0 %v1117
        %v1336 = vpop.f32.mrf.mxu0
        %v1337 = vadd.f32 %v1140, %v1336
        %v1338 = vpop.f32.mrf.mxu0
        %v1339 = vpop.f32.mrf.mxu0
        %v1340 = vadd.f32 %v1140, %v1339
        %v1341 = vpop.f32.mrf.mxu0
        %1342 = vmatprep.mubr.bf16.mxu0 0
        %1343 = vmatmul.mubr.bf16.gmra.mxu0 %v1118
        %v1344 = vpop.f32.mrf.mxu0
        %v1345 = vadd.f32 %v1140, %v1344
        %v1346 = vpop.f32.mrf.mxu0
        %v1347 = vpop.f32.mrf.mxu0
        %v1348 = vadd.f32 %v1140, %v1347
        %v1349 = vpop.f32.mrf.mxu0
        %1350 = vdwg.mxu0
        %1351 = vadd.xlane.f32.xlu0 %v1225
        %v1352 = vpop.xlane.xlu0 %1351
        %1353 = vadd.xlane.f32.xlu0 %v1228
        %v1354 = vpop.xlane.xlu0 %1353
        %1355 = vadd.xlane.f32.xlu0 %v1233
        %v1356 = vpop.xlane.xlu0 %1355
        %1357 = vadd.xlane.f32.xlu0 %v1236
        %v1358 = vpop.xlane.xlu0 %1357
        %1359 = vadd.xlane.f32.xlu0 %v1241
        %v1360 = vpop.xlane.xlu0 %1359
        %1361 = vadd.xlane.f32.xlu0 %v1244
        %v1362 = vpop.xlane.xlu0 %1361
        %1363 = vadd.xlane.f32.xlu0 %v1249
        %v1364 = vpop.xlane.xlu0 %1363
        %1365 = vadd.xlane.f32.xlu0 %v1252
        %v1366 = vpop.xlane.xlu0 %1365
        %1367 = vadd.xlane.f32.xlu0 %v1257
        %v1368 = vpop.xlane.xlu0 %1367
        %1369 = vadd.xlane.f32.xlu0 %v1260
        %v1370 = vpop.xlane.xlu0 %1369
        %1371 = vadd.xlane.f32.xlu0 %v1265
        %v1372 = vpop.xlane.xlu0 %1371
        %1373 = vadd.xlane.f32.xlu0 %v1268
        %v1374 = vpop.xlane.xlu0 %1373
        %1375 = vadd.xlane.f32.xlu0 %v1273
        %v1376 = vpop.xlane.xlu0 %1375
        %1377 = vadd.xlane.f32.xlu0 %v1276
        %v1378 = vpop.xlane.xlu0 %1377
        %1379 = vadd.xlane.f32.xlu0 %v1281
        %v1380 = vpop.xlane.xlu0 %1379
        %1381 = vadd.xlane.f32.xlu0 %v1284
        %v1382 = vpop.xlane.xlu0 %1381
        %1383 = vadd.xlane.f32.xlu0 %v1289
        %v1384 = vpop.xlane.xlu0 %1383
        %1385 = vadd.xlane.f32.xlu0 %v1292
        %v1386 = vpop.xlane.xlu0 %1385
        %1387 = vadd.xlane.f32.xlu0 %v1297
        %v1388 = vpop.xlane.xlu0 %1387
        %1389 = vadd.xlane.f32.xlu0 %v1300
        %v1390 = vpop.xlane.xlu0 %1389
        %1391 = vadd.xlane.f32.xlu0 %v1305
        %v1392 = vpop.xlane.xlu0 %1391
        %1393 = vadd.xlane.f32.xlu0 %v1308
        %v1394 = vpop.xlane.xlu0 %1393
        %1395 = vadd.xlane.f32.xlu0 %v1313
        %v1396 = vpop.xlane.xlu0 %1395
        %1397 = vadd.xlane.f32.xlu0 %v1316
        %v1398 = vpop.xlane.xlu0 %1397
        %1399 = vadd.xlane.f32.xlu0 %v1321
        %v1400 = vpop.xlane.xlu0 %1399
        %1401 = vadd.xlane.f32.xlu0 %v1324
        %v1402 = vpop.xlane.xlu0 %1401
        %1403 = vadd.xlane.f32.xlu0 %v1329
        %v1404 = vpop.xlane.xlu0 %1403
        %1405 = vadd.xlane.f32.xlu0 %v1332
        %v1406 = vpop.xlane.xlu0 %1405
        %1407 = vadd.xlane.f32.xlu0 %v1337
        %v1408 = vpop.xlane.xlu0 %1407
        %1409 = vadd.xlane.f32.xlu0 %v1340
        %v1410 = vpop.xlane.xlu0 %1409
        %1411 = vadd.xlane.f32.xlu0 %v1345
        %v1412 = vpop.xlane.xlu0 %1411
        %1413 = vadd.xlane.f32.xlu0 %v1348
        %v1414 = vpop.xlane.xlu0 %1413
        %v1415 = vrcp.pop 128.0
        %v1416 = vmul.f32 %v1352, %v1415
        %v1417 = vmul.f32 %v1354, %v1415
        %v1418 = vmul.f32 %v1356, %v1415
        %v1419 = vmul.f32 %v1358, %v1415
        %v1420 = vmul.f32 %v1360, %v1415
        %v1421 = vmul.f32 %v1362, %v1415
        %v1422 = vmul.f32 %v1364, %v1415
        %v1423 = vmul.f32 %v1366, %v1415
        %v1424 = vmul.f32 %v1368, %v1415
        %v1425 = vmul.f32 %v1370, %v1415
        %v1426 = vmul.f32 %v1372, %v1415
        %v1427 = vmul.f32 %v1374, %v1415
        %v1428 = vmul.f32 %v1376, %v1415
        %v1429 = vmul.f32 %v1378, %v1415
        %v1430 = vmul.f32 %v1380, %v1415
        %v1431 = vmul.f32 %v1382, %v1415
        %v1432 = vmul.f32 %v1384, %v1415
        %v1433 = vmul.f32 %v1386, %v1415
        %v1434 = vmul.f32 %v1388, %v1415
        %v1435 = vmul.f32 %v1390, %v1415
        %v1436 = vmul.f32 %v1392, %v1415
        %v1437 = vmul.f32 %v1394, %v1415
        %v1438 = vmul.f32 %v1396, %v1415
        %v1439 = vmul.f32 %v1398, %v1415
        %v1440 = vmul.f32 %v1400, %v1415
        %v1441 = vmul.f32 %v1402, %v1415
        %v1442 = vmul.f32 %v1404, %v1415
        %v1443 = vmul.f32 %v1406, %v1415
        %v1444 = vmul.f32 %v1408, %v1415
        %v1445 = vmul.f32 %v1410, %v1415
        %v1446 = vmul.f32 %v1412, %v1415
        %v1447 = vmul.f32 %v1414, %v1415
        %v1448 = vsub.f32 %v1225, %v1416
        %v1449 = vsub.f32 %v1228, %v1417
        %v1450 = vsub.f32 %v1233, %v1418
        %v1451 = vsub.f32 %v1236, %v1419
        %v1452 = vsub.f32 %v1241, %v1420
        %v1453 = vsub.f32 %v1244, %v1421
        %v1454 = vsub.f32 %v1249, %v1422
        %v1455 = vsub.f32 %v1252, %v1423
        %v1456 = vsub.f32 %v1257, %v1424
        %v1457 = vsub.f32 %v1260, %v1425
        %v1458 = vsub.f32 %v1265, %v1426
        %v1459 = vsub.f32 %v1268, %v1427
        %v1460 = vsub.f32 %v1273, %v1428
        %v1461 = vsub.f32 %v1276, %v1429
        %v1462 = vsub.f32 %v1281, %v1430
        %v1463 = vsub.f32 %v1284, %v1431
        %v1464 = vsub.f32 %v1289, %v1432
        %v1465 = vsub.f32 %v1292, %v1433
        %v1466 = vsub.f32 %v1297, %v1434
        %v1467 = vsub.f32 %v1300, %v1435
        %v1468 = vsub.f32 %v1305, %v1436
        %v1469 = vsub.f32 %v1308, %v1437
        %v1470 = vsub.f32 %v1313, %v1438
        %v1471 = vsub.f32 %v1316, %v1439
        %v1472 = vsub.f32 %v1321, %v1440
        %v1473 = vsub.f32 %v1324, %v1441
        %v1474 = vsub.f32 %v1329, %v1442
        %v1475 = vsub.f32 %v1332, %v1443
        %v1476 = vsub.f32 %v1337, %v1444
        %v1477 = vsub.f32 %v1340, %v1445
        %v1478 = vsub.f32 %v1345, %v1446
        %v1479 = vsub.f32 %v1348, %v1447
        %v1480 = vmul.f32 %v1448, %v1448
        %v1481 = vmul.f32 %v1449, %v1449
        %v1482 = vmul.f32 %v1450, %v1450
        %v1483 = vmul.f32 %v1451, %v1451
        %v1484 = vmul.f32 %v1452, %v1452
        %v1485 = vmul.f32 %v1453, %v1453
        %v1486 = vmul.f32 %v1454, %v1454
        %v1487 = vmul.f32 %v1455, %v1455
        %v1488 = vmul.f32 %v1456, %v1456
        %v1489 = vmul.f32 %v1457, %v1457
        %v1490 = vmul.f32 %v1458, %v1458
        %v1491 = vmul.f32 %v1459, %v1459
        %v1492 = vmul.f32 %v1460, %v1460
        %v1493 = vmul.f32 %v1461, %v1461
        %v1494 = vmul.f32 %v1462, %v1462
        %v1495 = vmul.f32 %v1463, %v1463
        %v1496 = vmul.f32 %v1464, %v1464
        %v1497 = vmul.f32 %v1465, %v1465
        %v1498 = vmul.f32 %v1466, %v1466
        %v1499 = vmul.f32 %v1467, %v1467
        %v1500 = vmul.f32 %v1468, %v1468
        %v1501 = vmul.f32 %v1469, %v1469
        %v1502 = vmul.f32 %v1470, %v1470
        %v1503 = vmul.f32 %v1471, %v1471
        %v1504 = vmul.f32 %v1472, %v1472
        %v1505 = vmul.f32 %v1473, %v1473
        %v1506 = vmul.f32 %v1474, %v1474
        %v1507 = vmul.f32 %v1475, %v1475
        %v1508 = vmul.f32 %v1476, %v1476
        %v1509 = vmul.f32 %v1477, %v1477
        %v1510 = vmul.f32 %v1478, %v1478
        %v1511 = vmul.f32 %v1479, %v1479
        %1512 = vadd.xlane.f32.xlu0 %v1480
        %v1513 = vpop.xlane.xlu0 %1512
        %1514 = vadd.xlane.f32.xlu0 %v1481
        %v1515 = vpop.xlane.xlu0 %1514
        %1516 = vadd.xlane.f32.xlu0 %v1482
        %v1517 = vpop.xlane.xlu0 %1516
        %1518 = vadd.xlane.f32.xlu0 %v1483
        %v1519 = vpop.xlane.xlu0 %1518
        %1520 = vadd.xlane.f32.xlu0 %v1484
        %v1521 = vpop.xlane.xlu0 %1520
        %1522 = vadd.xlane.f32.xlu0 %v1485
        %v1523 = vpop.xlane.xlu0 %1522
        %1524 = vadd.xlane.f32.xlu0 %v1486
        %v1525 = vpop.xlane.xlu0 %1524
        %1526 = vadd.xlane.f32.xlu0 %v1487
        %v1527 = vpop.xlane.xlu0 %1526
        %1528 = vadd.xlane.f32.xlu0 %v1488
        %v1529 = vpop.xlane.xlu0 %1528
        %1530 = vadd.xlane.f32.xlu0 %v1489
        %v1531 = vpop.xlane.xlu0 %1530
        %1532 = vadd.xlane.f32.xlu0 %v1490
        %v1533 = vpop.xlane.xlu0 %1532
        %1534 = vadd.xlane.f32.xlu0 %v1491
        %v1535 = vpop.xlane.xlu0 %1534
        %1536 = vadd.xlane.f32.xlu0 %v1492
        %v1537 = vpop.xlane.xlu0 %1536
        %1538 = vadd.xlane.f32.xlu0 %v1493
        %v1539 = vpop.xlane.xlu0 %1538
        %1540 = vadd.xlane.f32.xlu0 %v1494
        %v1541 = vpop.xlane.xlu0 %1540
        %1542 = vadd.xlane.f32.xlu0 %v1495
        %v1543 = vpop.xlane.xlu0 %1542
        %1544 = vadd.xlane.f32.xlu0 %v1496
        %v1545 = vpop.xlane.xlu0 %1544
        %1546 = vadd.xlane.f32.xlu0 %v1497
        %v1547 = vpop.xlane.xlu0 %1546
        %1548 = vadd.xlane.f32.xlu0 %v1498
        %v1549 = vpop.xlane.xlu0 %1548
        %1550 = vadd.xlane.f32.xlu0 %v1499
        %v1551 = vpop.xlane.xlu0 %1550
        %1552 = vadd.xlane.f32.xlu0 %v1500
        %v1553 = vpop.xlane.xlu0 %1552
        %1554 = vadd.xlane.f32.xlu0 %v1501
        %v1555 = vpop.xlane.xlu0 %1554
        %1556 = vadd.xlane.f32.xlu0 %v1502
        %v1557 = vpop.xlane.xlu0 %1556
        %1558 = vadd.xlane.f32.xlu0 %v1503
        %v1559 = vpop.xlane.xlu0 %1558
        %1560 = vadd.xlane.f32.xlu0 %v1504
        %v1561 = vpop.xlane.xlu0 %1560
        %1562 = vadd.xlane.f32.xlu0 %v1505
        %v1563 = vpop.xlane.xlu0 %1562
        %1564 = vadd.xlane.f32.xlu0 %v1506
        %v1565 = vpop.xlane.xlu0 %1564
        %1566 = vadd.xlane.f32.xlu0 %v1507
        %v1567 = vpop.xlane.xlu0 %1566
        %1568 = vadd.xlane.f32.xlu0 %v1508
        %v1569 = vpop.xlane.xlu0 %1568
        %1570 = vadd.xlane.f32.xlu0 %v1509
        %v1571 = vpop.xlane.xlu0 %1570
        %1572 = vadd.xlane.f32.xlu0 %v1510
        %v1573 = vpop.xlane.xlu0 %1572
        %1574 = vadd.xlane.f32.xlu0 %v1511
        %v1575 = vpop.xlane.xlu0 %1574
        %v1576 = vmul.f32 %v1513, %v1415
        %v1577 = vmul.f32 %v1515, %v1415
        %v1578 = vmul.f32 %v1517, %v1415
        %v1579 = vmul.f32 %v1519, %v1415
        %v1580 = vmul.f32 %v1521, %v1415
        %v1581 = vmul.f32 %v1523, %v1415
        %v1582 = vmul.f32 %v1525, %v1415
        %v1583 = vmul.f32 %v1527, %v1415
        %v1584 = vmul.f32 %v1529, %v1415
        %v1585 = vmul.f32 %v1531, %v1415
        %v1586 = vmul.f32 %v1533, %v1415
        %v1587 = vmul.f32 %v1535, %v1415
        %v1588 = vmul.f32 %v1537, %v1415
        %v1589 = vmul.f32 %v1539, %v1415
        %v1590 = vmul.f32 %v1541, %v1415
        %v1591 = vmul.f32 %v1543, %v1415
        %v1592 = vmul.f32 %v1545, %v1415
        %v1593 = vmul.f32 %v1547, %v1415
        %v1594 = vmul.f32 %v1549, %v1415
        %v1595 = vmul.f32 %v1551, %v1415
        %v1596 = vmul.f32 %v1553, %v1415
        %v1597 = vmul.f32 %v1555, %v1415
        %v1598 = vmul.f32 %v1557, %v1415
        %v1599 = vmul.f32 %v1559, %v1415
        %v1600 = vmul.f32 %v1561, %v1415
        %v1601 = vmul.f32 %v1563, %v1415
        %v1602 = vmul.f32 %v1565, %v1415
        %v1603 = vmul.f32 %v1567, %v1415
        %v1604 = vmul.f32 %v1569, %v1415
        %v1605 = vmul.f32 %v1571, %v1415
        %v1606 = vmul.f32 %v1573, %v1415
        %v1607 = vmul.f32 %v1575, %v1415
        %v1608 = vadd.f32 %v1576, 1e-05
        %v1609 = vadd.f32 %v1577, 1e-05
        %v1610 = vadd.f32 %v1578, 1e-05
        %v1611 = vadd.f32 %v1579, 1e-05
        %v1612 = vadd.f32 %v1580, 1e-05
        %v1613 = vadd.f32 %v1581, 1e-05
        %v1614 = vadd.f32 %v1582, 1e-05
        %v1615 = vadd.f32 %v1583, 1e-05
        %v1616 = vadd.f32 %v1584, 1e-05
        %v1617 = vadd.f32 %v1585, 1e-05
        %v1618 = vadd.f32 %v1586, 1e-05
        %v1619 = vadd.f32 %v1587, 1e-05
        %v1620 = vadd.f32 %v1588, 1e-05
        %v1621 = vadd.f32 %v1589, 1e-05
        %v1622 = vadd.f32 %v1590, 1e-05
        %v1623 = vadd.f32 %v1591, 1e-05
        %v1624 = vadd.f32 %v1592, 1e-05
        %v1625 = vadd.f32 %v1593, 1e-05
        %v1626 = vadd.f32 %v1594, 1e-05
        %v1627 = vadd.f32 %v1595, 1e-05
        %v1628 = vadd.f32 %v1596, 1e-05
        %v1629 = vadd.f32 %v1597, 1e-05
        %v1630 = vadd.f32 %v1598, 1e-05
        %v1631 = vadd.f32 %v1599, 1e-05
        %v1632 = vadd.f32 %v1600, 1e-05
        %v1633 = vadd.f32 %v1601, 1e-05
        %v1634 = vadd.f32 %v1602, 1e-05
        %v1635 = vadd.f32 %v1603, 1e-05
        %v1636 = vadd.f32 %v1604, 1e-05
        %v1637 = vadd.f32 %v1605, 1e-05
        %v1638 = vadd.f32 %v1606, 1e-05
        %v1639 = vadd.f32 %v1607, 1e-05
        %v1640 = vrsqrt.pop %v1608
        %v1641 = vrsqrt.pop %v1609
        %v1642 = vrsqrt.pop %v1610
        %v1643 = vrsqrt.pop %v1611
        %v1644 = vrsqrt.pop %v1612
        %v1645 = vrsqrt.pop %v1613
        %v1646 = vrsqrt.pop %v1614
        %v1647 = vrsqrt.pop %v1615
        %v1648 = vrsqrt.pop %v1616
        %v1649 = vrsqrt.pop %v1617
        %v1650 = vrsqrt.pop %v1618
        %v1651 = vrsqrt.pop %v1619
        %v1652 = vrsqrt.pop %v1620
        %v1653 = vrsqrt.pop %v1621
        %v1654 = vrsqrt.pop %v1622
        %v1655 = vrsqrt.pop %v1623
        %v1656 = vrsqrt.pop %v1624
        %v1657 = vrsqrt.pop %v1625
        %v1658 = vrsqrt.pop %v1626
        %v1659 = vrsqrt.pop %v1627
        %v1660 = vrsqrt.pop %v1628
        %v1661 = vrsqrt.pop %v1629
        %v1662 = vrsqrt.pop %v1630
        %v1663 = vrsqrt.pop %v1631
        %v1664 = vrsqrt.pop %v1632
        %v1665 = vrsqrt.pop %v1633
        %v1666 = vrsqrt.pop %v1634
        %v1667 = vrsqrt.pop %v1635
        %v1668 = vrsqrt.pop %v1636
        %v1669 = vrsqrt.pop %v1637
        %v1670 = vrsqrt.pop %v1638
        %v1671 = vrsqrt.pop %v1639
        %v1672 = vmul.f32 %v1448, %v1640
        %v1673 = vmul.f32 %v1449, %v1641
        %v1674 = vmul.f32 %v1450, %v1642
        %v1675 = vmul.f32 %v1451, %v1643
        %v1676 = vmul.f32 %v1452, %v1644
        %v1677 = vmul.f32 %v1453, %v1645
        %v1678 = vmul.f32 %v1454, %v1646
        %v1679 = vmul.f32 %v1455, %v1647
        %v1680 = vmul.f32 %v1456, %v1648
        %v1681 = vmul.f32 %v1457, %v1649
        %v1682 = vmul.f32 %v1458, %v1650
        %v1683 = vmul.f32 %v1459, %v1651
        %v1684 = vmul.f32 %v1460, %v1652
        %v1685 = vmul.f32 %v1461, %v1653
        %v1686 = vmul.f32 %v1462, %v1654
        %v1687 = vmul.f32 %v1463, %v1655
        %v1688 = vmul.f32 %v1464, %v1656
        %v1689 = vmul.f32 %v1465, %v1657
        %v1690 = vmul.f32 %v1466, %v1658
        %v1691 = vmul.f32 %v1467, %v1659
        %v1692 = vmul.f32 %v1468, %v1660
        %v1693 = vmul.f32 %v1469, %v1661
        %v1694 = vmul.f32 %v1470, %v1662
        %v1695 = vmul.f32 %v1471, %v1663
        %v1696 = vmul.f32 %v1472, %v1664
        %v1697 = vmul.f32 %v1473, %v1665
        %v1698 = vmul.f32 %v1474, %v1666
        %v1699 = vmul.f32 %v1475, %v1667
        %v1700 = vmul.f32 %v1476, %v1668
        %v1701 = vmul.f32 %v1477, %v1669
        %v1702 = vmul.f32 %v1478, %v1670
        %v1703 = vmul.f32 %v1479, %v1671
        %v1704 = vld [vmem:[%s7] sm:$0x1]
        %v1706 = vlaneseq
        %v1707 = vshrl.u32 %v1706, 7
        %v1708 = vsub.s32 0, %v1707
        %v1709 = vrot.slane %v1704, %v1708
        %v1711 = vmul.f32 %v1672, %v1709
        %v1712 = vmul.f32 %v1673, %v1709
        %v1713 = vmul.f32 %v1674, %v1709
        %v1714 = vmul.f32 %v1675, %v1709
        %v1715 = vmul.f32 %v1676, %v1709
        %v1716 = vmul.f32 %v1677, %v1709
        %v1717 = vmul.f32 %v1678, %v1709
        %v1718 = vmul.f32 %v1679, %v1709
        %v1719 = vmul.f32 %v1680, %v1709
        %v1720 = vmul.f32 %v1681, %v1709
        %v1721 = vmul.f32 %v1682, %v1709
        %v1722 = vmul.f32 %v1683, %v1709
        %v1723 = vmul.f32 %v1684, %v1709
        %v1724 = vmul.f32 %v1685, %v1709
        %v1725 = vmul.f32 %v1686, %v1709
        %v1726 = vmul.f32 %v1687, %v1709
        %v1727 = vmul.f32 %v1688, %v1709
        %v1728 = vmul.f32 %v1689, %v1709
        %v1729 = vmul.f32 %v1690, %v1709
        %v1730 = vmul.f32 %v1691, %v1709
        %v1731 = vmul.f32 %v1692, %v1709
        %v1732 = vmul.f32 %v1693, %v1709
        %v1733 = vmul.f32 %v1694, %v1709
        %v1734 = vmul.f32 %v1695, %v1709
        %v1735 = vmul.f32 %v1696, %v1709
        %v1736 = vmul.f32 %v1697, %v1709
        %v1737 = vmul.f32 %v1698, %v1709
        %v1738 = vmul.f32 %v1699, %v1709
        %v1739 = vmul.f32 %v1700, %v1709
        %v1740 = vmul.f32 %v1701, %v1709
        %v1741 = vmul.f32 %v1702, %v1709
        %v1742 = vmul.f32 %v1703, %v1709
        %v1743 = vld [vmem:[%s8] sm:$0x1]
        %v1745 = vlaneseq
        %v1746 = vshrl.u32 %v1745, 7
        %v1747 = vsub.s32 0, %v1746
        %v1748 = vrot.slane %v1743, %v1747
        %v1750 = vadd.f32 %v1711, %v1748
        %v1751 = vadd.f32 %v1712, %v1748
        %v1752 = vadd.f32 %v1713, %v1748
        %v1753 = vadd.f32 %v1714, %v1748
        %v1754 = vadd.f32 %v1715, %v1748
        %v1755 = vadd.f32 %v1716, %v1748
        %v1756 = vadd.f32 %v1717, %v1748
        %v1757 = vadd.f32 %v1718, %v1748
        %v1758 = vadd.f32 %v1719, %v1748
        %v1759 = vadd.f32 %v1720, %v1748
        %v1760 = vadd.f32 %v1721, %v1748
        %v1761 = vadd.f32 %v1722, %v1748
        %v1762 = vadd.f32 %v1723, %v1748
        %v1763 = vadd.f32 %v1724, %v1748
        %v1764 = vadd.f32 %v1725, %v1748
        %v1765 = vadd.f32 %v1726, %v1748
        %v1766 = vadd.f32 %v1727, %v1748
        %v1767 = vadd.f32 %v1728, %v1748
        %v1768 = vadd.f32 %v1729, %v1748
        %v1769 = vadd.f32 %v1730, %v1748
        %v1770 = vadd.f32 %v1731, %v1748
        %v1771 = vadd.f32 %v1732, %v1748
        %v1772 = vadd.f32 %v1733, %v1748
        %v1773 = vadd.f32 %v1734, %v1748
        %v1774 = vadd.f32 %v1735, %v1748
        %v1775 = vadd.f32 %v1736, %v1748
        %v1776 = vadd.f32 %v1737, %v1748
        %v1777 = vadd.f32 %v1738, %v1748
        %v1778 = vadd.f32 %v1739, %v1748
        %v1779 = vadd.f32 %v1740, %v1748
        %v1780 = vadd.f32 %v1741, %v1748
        %v1781 = vadd.f32 %v1742, %v1748
        %1782 = vst [vmem:[%s395] sm:$0xff] %v1750
        %1783 = vst [vmem:[%s395 + $0x8] sm:$0xff] %v1751
        %1784 = vst [vmem:[%s395 + $0x10] sm:$0xff] %v1752
        %1785 = vst [vmem:[%s395 + $0x18] sm:$0xff] %v1753
        %1786 = vst [vmem:[%s395 + $0x20] sm:$0xff] %v1754
        %1787 = vst [vmem:[%s395 + $0x28] sm:$0xff] %v1755
        %1788 = vst [vmem:[%s395 + $0x30] sm:$0xff] %v1756
        %1789 = vst [vmem:[%s395 + $0x38] sm:$0xff] %v1757
        %1790 = vst [vmem:[%s395 + $0x40] sm:$0xff] %v1758
        %1791 = vst [vmem:[%s395 + $0x48] sm:$0xff] %v1759
        %1792 = vst [vmem:[%s395 + $0x50] sm:$0xff] %v1760
        %1793 = vst [vmem:[%s395 + $0x58] sm:$0xff] %v1761
        %1794 = vst [vmem:[%s395 + $0x60] sm:$0xff] %v1762
        %1795 = vst [vmem:[%s395 + $0x68] sm:$0xff] %v1763
        %1796 = vst [vmem:[%s395 + $0x70] sm:$0xff] %v1764
        %1797 = vst [vmem:[%s395 + $0x78] sm:$0xff] %v1765
        %1798 = vst [vmem:[%s395 + $0x80] sm:$0xff] %v1766
        %1799 = vst [vmem:[%s395 + $0x88] sm:$0xff] %v1767
        %1800 = vst [vmem:[%s395 + $0x90] sm:$0xff] %v1768
        %1801 = vst [vmem:[%s395 + $0x98] sm:$0xff] %v1769
        %1802 = vst [vmem:[%s395 + $0xa0] sm:$0xff] %v1770
        %1803 = vst [vmem:[%s395 + $0xa8] sm:$0xff] %v1771
        %1804 = vst [vmem:[%s395 + $0xb0] sm:$0xff] %v1772
        %1805 = vst [vmem:[%s395 + $0xb8] sm:$0xff] %v1773
        %1806 = vst [vmem:[%s395 + $0xc0] sm:$0xff] %v1774
        %1807 = vst [vmem:[%s395 + $0xc8] sm:$0xff] %v1775
        %1808 = vst [vmem:[%s395 + $0xd0] sm:$0xff] %v1776
        %1809 = vst [vmem:[%s395 + $0xd8] sm:$0xff] %v1777
        %1810 = vst [vmem:[%s395 + $0xe0] sm:$0xff] %v1778
        %1811 = vst [vmem:[%s395 + $0xe8] sm:$0xff] %v1779
        %1812 = vst [vmem:[%s395 + $0xf0] sm:$0xff] %v1780
        %1813 = vst [vmem:[%s395 + $0xf8] sm:$0xff] %v1781
        %s1814 = sand.u32 %s230, 1
        %s1815 = scalar_lea.sflag [#allocation4], %s1814
        %s1816 = sand.u32 %s230, 1
        %s1817 = smul.addr %s1816, 256
        %s1818 = scalar_lea.vmem [#allocation10], %s1817
        // Predicated region
        $region73: #{mlp_forward.1} parent=55 // pred_check
          %p1819 = pneg %p240
        $region74: #{mlp_forward.1} parent=55 // pred_check_branch
          %1821 = sbr.rel (%p1819) target = $region76
        $region75: #{mlp_forward.1} parent=55 // pred_region
          %s1822 = smul.u32 32, %s28
          %s1824 = ssub.s32 4096, 4096
          %1825 = vsyncadd %s1815, %s1824
          %s1826 = smul.addr %s1822, 128
          %s1827 = scalar_lea.hbm %s9, %s1826
          %s1828 = sshll.u32 %s1818, 4
          %s1829 = int_to_ptr.vmem [resolvable:$true] %s1828
          %1834 = dma.vmem_to_hbm [thread:$0]  %s1829, 4096, %s1827, %s1815, 128, 128, 8
        $region76: #{mlp_forward.1} parent=55 // pred_fallthru
          _
      $region56: #{mlp_forward.1} parent=5 // pred_fallthru
        _
      %p1835 = scmp.le.s32.totalorder 2, %s23
      // Predicated region
      $region77: #{mlp_forward.1} parent=5 // pred_check
        %p1836 = pneg %p1835
      $region78: #{mlp_forward.1} parent=5 // pred_check_branch
        %1838 = sbr.rel (%p1836) target = $region80
      $region79: #{mlp_forward.1} parent=5 // pred_region
        %s1839 = ssub.s32 %s23, 2
        // Predicated region
        $region81: #{mlp_forward.1} parent=79 // pred_check
          %p1840 = pneg %p246
        $region82: #{mlp_forward.1} parent=79 // pred_check_branch
          %1842 = sbr.rel (%p1840) target = $region84
        $region83: #{mlp_forward.1} parent=79 // pred_region
          %s1843 = sand.u32 %s231, 1
          %s1844 = scalar_lea.sflag [#allocation4], %s1843
          %s1845 = sand.u32 %s231, 1
          %s1846 = smul.addr %s1845, 256
          %s1847 = scalar_lea.vmem [#allocation10], %s1846
          %1848 = dma.done %s1844, 4096
        $region84: #{mlp_forward.1} parent=79 // pred_fallthru
          _
      $region80: #{mlp_forward.1} parent=5 // pred_fallthru
        _
    $region6: #{mlp_forward.1} parent=1 // loop_footer
      %s27 = sadd.s32 1, %s23
    $region7: #{mlp_forward.1} parent=1 // loop_footer_branch
      %22 = sbr.rel target = $region3
    $region8: #{mlp_forward.1} parent=1 // loop_exit
      _
    %1849 = vsyncpa [#allocation3], 1
    %s1850 = scalar_lea.sflag [#allocation3], 1
    %1851 = vsyncpa %s1850, 1
    %1852 = vsyncpa [#allocation6], 1
    %1853 = vsyncpa [#allocation9], 1
    %1854 = vsyncpa [#allocation4], 1
    %s1855 = scalar_lea.sflag [#allocation4], 1
    %1856 = vsyncpa %s1855, 1

</llo_original>
